<compile_context>
chip_gen: v7x
topology: tpu7x:2x2x1
jax: 0.10.0
libtpu: 0.0.40
codegen_flags: <defaults>
</compile_context>

<pallas_src>
import functools
import math

import jax
import jax.numpy as jnp
from jax.experimental import pallas as pl
from jax.experimental.pallas import tpu as pltpu

_VMEM_LIMIT = 48 * 1024 * 1024  # headroom under v7x's 64 MiB physical VMEM


def _pick_row_tile(m):
    """Largest MXU-friendly row tile that evenly divides m (else full m)."""
    for t in (512, 256, 128, 64, 32, 16, 8):
        if m % t == 0:
            return t
    return m


# -----------------------------------------------------------------------------
# Fused QKV projection:
#   q = xq @ Wq + bq ; k = xk @ Wk + bk ; v = xv @ Wv + bv
# One pallas_call tiled over M; the three weights stay resident across steps.
# -----------------------------------------------------------------------------
def _qkv_proj_kernel(xq_ref, xk_ref, xv_ref,
                     wq_ref, wk_ref, wv_ref,
                     bq_ref, bk_ref, bv_ref,
                     q_ref, k_ref, v_ref):
    def proj(x_ref, w_ref, b_ref, o_ref):
        x = x_ref[...].astype(jnp.bfloat16)          # cast hidden under MXU work
        acc = jnp.dot(x, w_ref[...], preferred_element_type=jnp.float32)
        o_ref[...] = (acc + b_ref[...]).astype(o_ref.dtype)

    proj(xq_ref, wq_ref, bq_ref, q_ref)
    proj(xk_ref, wk_ref, bk_ref, k_ref)
    proj(xv_ref, wv_ref, bv_ref, v_ref)


def qkv_projection(xq, xk, xv, wq, wk, wv, bq, bk, bv):
    """xq/xk/xv: (M, E) f32; w*: (E, E) bf16; b*: (1, E) f32 -> 3 x (M, E) f32."""
    M, E = xq.shape
    tm = _pick_row_tile(M)

    x_spec = pl.BlockSpec((tm, E), lambda i: (i, 0))
    w_spec = pl.BlockSpec((E, E), lambda i: (0, 0))   # resident across the grid
    b_spec = pl.BlockSpec((1, E), lambda i: (0, 0))
    o_spec = pl.BlockSpec((tm, E), lambda i: (i, 0))
    out_sd = jax.ShapeDtypeStruct((M, E), jnp.float32)

    return pl.pallas_call(
        _qkv_proj_kernel,
        grid=(pl.cdiv(M, tm),),
        out_shape=(out_sd, out_sd, out_sd),
        in_specs=[x_spec, x_spec, x_spec,
                  w_spec, w_spec, w_spec,
                  b_spec, b_spec, b_spec],
        out_specs=(o_spec, o_spec, o_spec),
        compiler_params=pltpu.CompilerParams(
            dimension_semantics=("parallel",),
            vmem_limit_bytes=_VMEM_LIMIT),
    )(xq, xk, xv, wq, wk, wv, bq, bk, bv)


# -----------------------------------------------------------------------------
# Generic tiled linear (used for fc_out):  out = x @ W + b
# -----------------------------------------------------------------------------
def _linear_kernel(x_ref, w_ref, b_ref, o_ref):
    x = x_ref[...].astype(jnp.bfloat16)
    acc = jnp.dot(x, w_ref[...], preferred_element_type=jnp.float32)
    o_ref[...] = (acc + b_ref[...]).astype(o_ref.dtype)


def linear(x, w, b):
    """x: (M, K) f32, w: (K, N) bf16, b: (1, N) f32 -> (M, N) f32. Tiled over M."""
    M, K = x.shape
    N = w.shape[1]
    tm = _pick_row_tile(M)
    return pl.pallas_call(
        _linear_kernel,
        grid=(pl.cdiv(M, tm),),
        out_shape=jax.ShapeDtypeStruct((M, N), jnp.float32),
        in_specs=[pl.BlockSpec((tm, K), lambda i: (i, 0)),
                  pl.BlockSpec((K, N), lambda i: (0, 0)),
                  pl.BlockSpec((1, N), lambda i: (0, 0))],
        out_specs=pl.BlockSpec((tm, N), lambda i: (i, 0)),
        compiler_params=pltpu.CompilerParams(
            dimension_semantics=("parallel",),
            vmem_limit_bytes=_VMEM_LIMIT),
    )(x, w, b)


# -----------------------------------------------------------------------------
# Attention core (all heads of one batch element per grid step):
#   energy = (q * scale) @ k^T ; attn = softmax(energy, -1) ; ctx = attn @ v
# -----------------------------------------------------------------------------
def _attention_kernel(q_ref, k_ref, v_ref, w_ref, ctx_ref, *, scale):
    # Refs are (H, S, D) / (H, S, S); the size-1 batch dim is squeezed away.
    q = (q_ref[...] * scale).astype(jnp.bfloat16)   # fold 1/sqrt(D) into q
    k = k_ref[...].astype(jnp.bfloat16)
    v = v_ref[...].astype(jnp.bfloat16)

    energy = jnp.einsum("hqd,hkd->hqk", q, k,
                        preferred_element_type=jnp.float32)        # (H, S, S)
    m = jnp.max(energy, axis=-1, keepdims=True)
    e = jnp.exp(energy - m)
    denom = jnp.sum(e, axis=-1, keepdims=True)
    attn = e * pl.reciprocal(denom, approx=True)                   # EUP slot

    w_ref[...] = attn.astype(w_ref.dtype)
    ctx_ref[...] = jnp.einsum(
        "hqk,hkd->hqd", attn.astype(jnp.bfloat16), v,
        preferred_element_type=jnp.float32).astype(ctx_ref.dtype)


def multi_head_attention_core(q, k, v, *, head_dim):
    """q, k, v: (B, H, S, D) f32 -> (attn_w (B,H,S,S) f32, ctx (B,H,S,D) f32)."""
    B, H, S, D = q.shape
    scale = 1.0 / math.sqrt(head_dim)

    kernel = functools.partial(_attention_kernel, scale=scale)
    qkv_spec = pl.BlockSpec((None, H, S, D), lambda b: (b, 0, 0, 0))
    w_spec = pl.BlockSpec((None, H, S, S), lambda b: (b, 0, 0, 0))

    attn_w, ctx = pl.pallas_call(
        kernel,
        grid=(B,),
        out_shape=(jax.ShapeDtypeStruct((B, H, S, S), jnp.float32),
                   jax.ShapeDtypeStruct((B, H, S, D), jnp.float32)),
        in_specs=[qkv_spec, qkv_spec, qkv_spec],
        out_specs=(w_spec, qkv_spec),
        compiler_params=pltpu.CompilerParams(
            dimension_semantics=("parallel",),
            vmem_limit_bytes=_VMEM_LIMIT),
    )(q, k, v)
    return attn_w, ctx


# -----------------------------------------------------------------------------
# Full module forward
# -----------------------------------------------------------------------------
def multi_head_attention(params, key, query, value, *, num_heads):
    """key/query/value: (B, S, E) f32 -> (output (B,S,E), attn_w (B,H,S,S))."""
    B, S, E = key.shape
    D = E // num_heads
    M = B * S
    bf16 = jnp.bfloat16

    # Cast weights to bf16 once (half the weight DMA bytes; f32 MXU accumulation).
    wq, wk, wv, wo = (params[n].astype(bf16) for n in ("wq", "wk", "wv", "wo"))
    bq, bk, bv, bo = (params[n].reshape(1, E) for n in ("bq", "bk", "bv", "bo"))

    q2, k2, v2 = qkv_projection(query.reshape(M, E), key.reshape(M, E),
                                value.reshape(M, E),
                                wq, wk, wv, bq, bk, bv)

    # Split heads: (B, S, E) -> (B, H, S, D).  Kept as an XLA transpose.
    def split_heads(x):
        return jnp.transpose(x.reshape(B, S, num_heads, D), (0, 2, 1, 3))

    attn_w, ctx = multi_head_attention_core(
        split_heads(q2), split_heads(k2), split_heads(v2), head_dim=D)

    # Merge heads and apply fc_out (dropout is identity at inference).
    ctx_merged = jnp.transpose(ctx, (0, 2, 1, 3)).reshape(M, E)
    out = linear(ctx_merged, wo, bo).reshape(B, S, E)
    return out, attn_w


def init_params(rng, embed_dim):
    """Deterministic parameter init matching nn.Linear shapes (stored transposed)."""
    keys = jax.random.split(rng, 8)
    bound = 1.0 / math.sqrt(embed_dim)

    def lin(kw, kb):
        w = jax.random.uniform(kw, (embed_dim, embed_dim), jnp.float32, -bound, bound)
        b = jax.random.uniform(kb, (embed_dim,), jnp.float32, -bound, bound)
        return w, b

    wk, bk = lin(keys[0], keys[1])
    wq, bq = lin(keys[2], keys[3])
    wv, bv = lin(keys[4], keys[5])
    wo, bo = lin(keys[6], keys[7])
    return dict(wk=wk, bk=bk, wq=wq, bq=bq, wv=wv, bv=bv, wo=wo, bo=bo)


if __name__ == "__main__":
    # Small shapes consistent with the module: B=2, S=8, embed_dim=32, heads=4.
    B, S, E, H = 2, 8, 32, 4

    root = jax.random.PRNGKey(0)
    k_p, k_key, k_query, k_value = jax.random.split(root, 4)

    params = init_params(k_p, E)
    key_in = jax.random.normal(k_key, (B, S, E), jnp.float32)
    query_in = jax.random.normal(k_query, (B, S, E), jnp.float32)
    value_in = jax.random.normal(k_value, (B, S, E), jnp.float32)

    fwd = jax.jit(functools.partial(multi_head_attention, num_heads=H))
    output, attn_w = fwd(params, key_in, query_in, value_in)
    jax.block_until_ready((output, attn_w))

    # Pure-JAX reference mirroring the kernel's bf16-input / f32-accum dtype flow.
    def ref_forward(p, key, query, value):
        bf = jnp.bfloat16

        def lin(x, w, b):
            return jnp.dot(x.astype(bf), w.astype(bf),
                           preferred_element_type=jnp.float32) + b

        k = lin(key, p["wk"], p["bk"])
        q = lin(query, p["wq"], p["bq"])
        v = lin(value, p["wv"], p["bv"])

        def split(x):
            return jnp.transpose(x.reshape(B, S, H, E // H), (0, 2, 1, 3))

        qh, kh, vh = split(q), split(k), split(v)
        scale = 1.0 / math.sqrt(E // H)
        energy = jnp.einsum("bhqd,bhkd->bhqk", (qh * scale).astype(bf),
                            kh.astype(bf), preferred_element_type=jnp.float32)
        aw = jax.nn.softmax(energy, axis=-1)
        ctx = jnp.einsum("bhqk,bhkd->bhqd", aw.astype(bf), vh.astype(bf),
                         preferred_element_type=jnp.float32)
        ctx = jnp.transpose(ctx, (0, 2, 1, 3)).reshape(B, S, E)
        out = lin(ctx, p["wo"], p["bo"])
        return out, aw

    ref_out, ref_aw = ref_forward(params, key_in, query_in, value_in)
    assert jnp.allclose(attn_w, ref_aw, atol=1e-2, rtol=1e-2), "attention weights mismatch"
    assert jnp.allclose(output, ref_out, atol=5e-2, rtol=5e-2), "output mismatch"

    print("KERNEL_OK")
</pallas_src>

<mosaic_0001>
module attributes {stable_mosaic.version = 11 : i64} {
  func.func @_qkv_proj_kernel(%arg0: i32, %arg1: memref<16x32xf32, #tpu.memory_space<vmem>>, %arg2: memref<16x32xf32, #tpu.memory_space<vmem>>, %arg3: memref<16x32xf32, #tpu.memory_space<vmem>>, %arg4: memref<32x32xbf16, #tpu.memory_space<vmem>>, %arg5: memref<32x32xbf16, #tpu.memory_space<vmem>>, %arg6: memref<32x32xbf16, #tpu.memory_space<vmem>>, %arg7: memref<1x32xf32, #tpu.memory_space<vmem>>, %arg8: memref<1x32xf32, #tpu.memory_space<vmem>>, %arg9: memref<1x32xf32, #tpu.memory_space<vmem>>, %arg10: memref<16x32xf32, #tpu.memory_space<vmem>>, %arg11: memref<16x32xf32, #tpu.memory_space<vmem>>, %arg12: memref<16x32xf32, #tpu.memory_space<vmem>>) attributes {dimension_semantics = [#tpu.dimension_semantics<parallel>], iteration_bounds = array<i64: 1>, scalar_prefetch = 0 : i64, scratch_operands = 0 : i64, tpu.core_type = #tpu.core_type<tc>, window_params = [{transform_indices = @transform_0, window_bounds = array<i64: 16, 32>}, {transform_indices = @transform_1, window_bounds = array<i64: 16, 32>}, {transform_indices = @transform_2, window_bounds = array<i64: 16, 32>}, {pipeline_mode = #tpu.pipeline_mode<synchronous>, transform_indices = @transform_3, window_bounds = array<i64: 32, 32>}, {pipeline_mode = #tpu.pipeline_mode<synchronous>, transform_indices = @transform_4, window_bounds = array<i64: 32, 32>}, {pipeline_mode = #tpu.pipeline_mode<synchronous>, transform_indices = @transform_5, window_bounds = array<i64: 32, 32>}, {pipeline_mode = #tpu.pipeline_mode<synchronous>, transform_indices = @transform_6, window_bounds = array<i64: 1, 32>}, {pipeline_mode = #tpu.pipeline_mode<synchronous>, transform_indices = @transform_7, window_bounds = array<i64: 1, 32>}, {pipeline_mode = #tpu.pipeline_mode<synchronous>, transform_indices = @transform_8, window_bounds = array<i64: 1, 32>}, {transform_indices = @transform_9, window_bounds = array<i64: 16, 32>}, {transform_indices = @transform_10, window_bounds = array<i64: 16, 32>}, {transform_indices = @transform_11, window_bounds = array<i64: 16, 32>}]} {
    %c0 = arith.constant 0 : index
    %c0_0 = arith.constant 0 : index
    %0 = vector.load %arg1[%c0, %c0_0] : memref<16x32xf32, #tpu.memory_space<vmem>>, vector<16x32xf32>
    %1 = arith.truncf %0 : vector<16x32xf32> to vector<16x32xbf16>
    %c0_1 = arith.constant 0 : index
    %c0_2 = arith.constant 0 : index
    %2 = vector.load %arg4[%c0_1, %c0_2] : memref<32x32xbf16, #tpu.memory_space<vmem>>, vector<32x32xbf16>
    %cst = arith.constant dense<0.000000e+00> : vector<16x32xf32>
    %3 = tpu.matmul %1, %2, %cst {dimension_numbers = #tpu.dot_dimension_numbers<[1], [0], [0], [1], [0, 0, 1, 1], [], []>} : vector<16x32xbf16>, vector<32x32xbf16>, vector<16x32xf32> -> vector<16x32xf32>
    %c0_3 = arith.constant 0 : index
    %c0_4 = arith.constant 0 : index
    %4 = vector.load %arg7[%c0_3, %c0_4] : memref<1x32xf32, #tpu.memory_space<vmem>>, vector<1x32xf32>
    %5 = vector.broadcast %4 : vector<1x32xf32> to vector<16x32xf32>
    %6 = arith.addf %3, %5 : vector<16x32xf32>
    %c0_5 = arith.constant 0 : index
    %c0_6 = arith.constant 0 : index
    %7 = vector.load %arg10[%c0_5, %c0_6] : memref<16x32xf32, #tpu.memory_space<vmem>>, vector<16x32xf32>
    tpu.vector_store %arg10[%c0_5, %c0_6], %6 {strides = array<i32>} : memref<16x32xf32, #tpu.memory_space<vmem>>, vector<16x32xf32>,
    %c0_7 = arith.constant 0 : index
    %c0_8 = arith.constant 0 : index
    %8 = vector.load %arg2[%c0_7, %c0_8] : memref<16x32xf32, #tpu.memory_space<vmem>>, vector<16x32xf32>
    %9 = arith.truncf %8 : vector<16x32xf32> to vector<16x32xbf16>
    %c0_9 = arith.constant 0 : index
    %c0_10 = arith.constant 0 : index
    %10 = vector.load %arg5[%c0_9, %c0_10] : memref<32x32xbf16, #tpu.memory_space<vmem>>, vector<32x32xbf16>
    %cst_11 = arith.constant dense<0.000000e+00> : vector<16x32xf32>
    %11 = tpu.matmul %9, %10, %cst_11 {dimension_numbers = #tpu.dot_dimension_numbers<[1], [0], [0], [1], [0, 0, 1, 1], [], []>} : vector<16x32xbf16>, vector<32x32xbf16>, vector<16x32xf32> -> vector<16x32xf32>
    %c0_12 = arith.constant 0 : index
    %c0_13 = arith.constant 0 : index
    %12 = vector.load %arg8[%c0_12, %c0_13] : memref<1x32xf32, #tpu.memory_space<vmem>>, vector<1x32xf32>
    %13 = vector.broadcast %12 : vector<1x32xf32> to vector<16x32xf32>
    %14 = arith.addf %11, %13 : vector<16x32xf32>
    %c0_14 = arith.constant 0 : index
    %c0_15 = arith.constant 0 : index
    %15 = vector.load %arg11[%c0_14, %c0_15] : memref<16x32xf32, #tpu.memory_space<vmem>>, vector<16x32xf32>
    tpu.vector_store %arg11[%c0_14, %c0_15], %14 {strides = array<i32>} : memref<16x32xf32, #tpu.memory_space<vmem>>, vector<16x32xf32>,
    %c0_16 = arith.constant 0 : index
    %c0_17 = arith.constant 0 : index
    %16 = vector.load %arg3[%c0_16, %c0_17] : memref<16x32xf32, #tpu.memory_space<vmem>>, vector<16x32xf32>
    %17 = arith.truncf %16 : vector<16x32xf32> to vector<16x32xbf16>
    %c0_18 = arith.constant 0 : index
    %c0_19 = arith.constant 0 : index
    %18 = vector.load %arg6[%c0_18, %c0_19] : memref<32x32xbf16, #tpu.memory_space<vmem>>, vector<32x32xbf16>
    %cst_20 = arith.constant dense<0.000000e+00> : vector<16x32xf32>
    %19 = tpu.matmul %17, %18, %cst_20 {dimension_numbers = #tpu.dot_dimension_numbers<[1], [0], [0], [1], [0, 0, 1, 1], [], []>} : vector<16x32xbf16>, vector<32x32xbf16>, vector<16x32xf32> -> vector<16x32xf32>
    %c0_21 = arith.constant 0 : index
    %c0_22 = arith.constant 0 : index
    %20 = vector.load %arg9[%c0_21, %c0_22] : memref<1x32xf32, #tpu.memory_space<vmem>>, vector<1x32xf32>
    %21 = vector.broadcast %20 : vector<1x32xf32> to vector<16x32xf32>
    %22 = arith.addf %19, %21 : vector<16x32xf32>
    %c0_23 = arith.constant 0 : index
    %c0_24 = arith.constant 0 : index
    %23 = vector.load %arg12[%c0_23, %c0_24] : memref<16x32xf32, #tpu.memory_space<vmem>>, vector<16x32xf32>
    tpu.vector_store %arg12[%c0_23, %c0_24], %22 {strides = array<i32>} : memref<16x32xf32, #tpu.memory_space<vmem>>, vector<16x32xf32>,
    return
  }
  func.func @transform_0(%arg0: i32) -> (i32, i32) {
    %c0_i32 = arith.constant 0 : i32
    %c0_i32_0 = arith.constant 0 : i32
    return %arg0, %c0_i32 : i32, i32
  }
  func.func @transform_1(%arg0: i32) -> (i32, i32) {
    %c0_i32 = arith.constant 0 : i32
    %c0_i32_0 = arith.constant 0 : i32
    return %arg0, %c0_i32 : i32, i32
  }
  func.func @transform_2(%arg0: i32) -> (i32, i32) {
    %c0_i32 = arith.constant 0 : i32
    %c0_i32_0 = arith.constant 0 : i32
    return %arg0, %c0_i32 : i32, i32
  }
  func.func @transform_3(%arg0: i32) -> (i32, i32) {
    %c0_i32 = arith.constant 0 : i32
    %c0_i32_0 = arith.constant 0 : i32
    %c0_i32_1 = arith.constant 0 : i32
    return %c0_i32, %c0_i32_0 : i32, i32
  }
  func.func @transform_4(%arg0: i32) -> (i32, i32) {
    %c0_i32 = arith.constant 0 : i32
    %c0_i32_0 = arith.constant 0 : i32
    %c0_i32_1 = arith.constant 0 : i32
    return %c0_i32, %c0_i32_0 : i32, i32
  }
  func.func @transform_5(%arg0: i32) -> (i32, i32) {
    %c0_i32 = arith.constant 0 : i32
    %c0_i32_0 = arith.constant 0 : i32
    %c0_i32_1 = arith.constant 0 : i32
    return %c0_i32, %c0_i32_0 : i32, i32
  }
  func.func @transform_6(%arg0: i32) -> (i32, i32) {
    %c0_i32 = arith.constant 0 : i32
    %c0_i32_0 = arith.constant 0 : i32
    %c0_i32_1 = arith.constant 0 : i32
    return %c0_i32, %c0_i32_0 : i32, i32
  }
  func.func @transform_7(%arg0: i32) -> (i32, i32) {
    %c0_i32 = arith.constant 0 : i32
    %c0_i32_0 = arith.constant 0 : i32
    %c0_i32_1 = arith.constant 0 : i32
    return %c0_i32, %c0_i32_0 : i32, i32
  }
  func.func @transform_8(%arg0: i32) -> (i32, i32) {
    %c0_i32 = arith.constant 0 : i32
    %c0_i32_0 = arith.constant 0 : i32
    %c0_i32_1 = arith.constant 0 : i32
    return %c0_i32, %c0_i32_0 : i32, i32
  }
  func.func @transform_9(%arg0: i32) -> (i32, i32) {
    %c0_i32 = arith.constant 0 : i32
    %c0_i32_0 = arith.constant 0 : i32
    return %arg0, %c0_i32 : i32, i32
  }
  func.func @transform_10(%arg0: i32) -> (i32, i32) {
    %c0_i32 = arith.constant 0 : i32
    %c0_i32_0 = arith.constant 0 : i32
    return %arg0, %c0_i32 : i32, i32
  }
  func.func @transform_11(%arg0: i32) -> (i32, i32) {
    %c0_i32 = arith.constant 0 : i32
    %c0_i32_0 = arith.constant 0 : i32
    return %arg0, %c0_i32 : i32, i32
  }
}

module attributes {stable_mosaic.version = 11 : i64} {
  func.func @_linear_kernel(%arg0: i32, %arg1: memref<16x32xf32, #tpu.memory_space<vmem>>, %arg2: memref<32x32xbf16, #tpu.memory_space<vmem>>, %arg3: memref<1x32xf32, #tpu.memory_space<vmem>>, %arg4: memref<16x32xf32, #tpu.memory_space<vmem>>) attributes {dimension_semantics = [#tpu.dimension_semantics<parallel>], iteration_bounds = array<i64: 1>, scalar_prefetch = 0 : i64, scratch_operands = 0 : i64, tpu.core_type = #tpu.core_type<tc>, window_params = [{transform_indices = @transform_0, window_bounds = array<i64: 16, 32>}, {pipeline_mode = #tpu.pipeline_mode<synchronous>, transform_indices = @transform_1, window_bounds = array<i64: 32, 32>}, {pipeline_mode = #tpu.pipeline_mode<synchronous>, transform_indices = @transform_2, window_bounds = array<i64: 1, 32>}, {transform_indices = @transform_3, window_bounds = array<i64: 16, 32>}]} {
    %c0 = arith.constant 0 : index
    %c0_0 = arith.constant 0 : index
    %0 = vector.load %arg1[%c0, %c0_0] : memref<16x32xf32, #tpu.memory_space<vmem>>, vector<16x32xf32>
    %1 = arith.truncf %0 : vector<16x32xf32> to vector<16x32xbf16>
    %c0_1 = arith.constant 0 : index
    %c0_2 = arith.constant 0 : index
    %2 = vector.load %arg2[%c0_1, %c0_2] : memref<32x32xbf16, #tpu.memory_space<vmem>>, vector<32x32xbf16>
    %cst = arith.constant dense<0.000000e+00> : vector<16x32xf32>
    %3 = tpu.matmul %1, %2, %cst {dimension_numbers = #tpu.dot_dimension_numbers<[1], [0], [0], [1], [0, 0, 1, 1], [], []>} : vector<16x32xbf16>, vector<32x32xbf16>, vector<16x32xf32> -> vector<16x32xf32>
    %c0_3 = arith.constant 0 : index
    %c0_4 = arith.constant 0 : index
    %4 = vector.load %arg3[%c0_3, %c0_4] : memref<1x32xf32, #tpu.memory_space<vmem>>, vector<1x32xf32>
    %5 = vector.broadcast %4 : vector<1x32xf32> to vector<16x32xf32>
    %6 = arith.addf %3, %5 : vector<16x32xf32>
    %c0_5 = arith.constant 0 : index
    %c0_6 = arith.constant 0 : index
    %7 = vector.load %arg4[%c0_5, %c0_6] : memref<16x32xf32, #tpu.memory_space<vmem>>, vector<16x32xf32>
    tpu.vector_store %arg4[%c0_5, %c0_6], %6 {strides = array<i32>} : memref<16x32xf32, #tpu.memory_space<vmem>>, vector<16x32xf32>,
    return
  }
  func.func @transform_0(%arg0: i32) -> (i32, i32) {
    %c0_i32 = arith.constant 0 : i32
    %c0_i32_0 = arith.constant 0 : i32
    return %arg0, %c0_i32 : i32, i32
  }
  func.func @transform_1(%arg0: i32) -> (i32, i32) {
    %c0_i32 = arith.constant 0 : i32
    %c0_i32_0 = arith.constant 0 : i32
    %c0_i32_1 = arith.constant 0 : i32
    return %c0_i32, %c0_i32_0 : i32, i32
  }
  func.func @transform_2(%arg0: i32) -> (i32, i32) {
    %c0_i32 = arith.constant 0 : i32
    %c0_i32_0 = arith.constant 0 : i32
    %c0_i32_1 = arith.constant 0 : i32
    return %c0_i32, %c0_i32_0 : i32, i32
  }
  func.func @transform_3(%arg0: i32) -> (i32, i32) {
    %c0_i32 = arith.constant 0 : i32
    %c0_i32_0 = arith.constant 0 : i32
    return %arg0, %c0_i32 : i32, i32
  }
}

module attributes {stable_mosaic.version = 11 : i64} {
  func.func @_attention_kernel(%arg0: i32, %arg1: memref<1x4x8x8xf32, #tpu.memory_space<vmem>>, %arg2: memref<1x4x8x8xf32, #tpu.memory_space<vmem>>, %arg3: memref<1x4x8x8xf32, #tpu.memory_space<vmem>>, %arg4: memref<1x4x8x8xf32, #tpu.memory_space<vmem>>, %arg5: memref<1x4x8x8xf32, #tpu.memory_space<vmem>>) attributes {dimension_semantics = [#tpu.dimension_semantics<parallel>], iteration_bounds = array<i64: 2>, scalar_prefetch = 0 : i64, scratch_operands = 0 : i64, tpu.core_type = #tpu.core_type<tc>, window_params = [{transform_indices = @transform_0, window_bounds = array<i64: 1, 4, 8, 8>}, {transform_indices = @transform_1, window_bounds = array<i64: 1, 4, 8, 8>}, {transform_indices = @transform_2, window_bounds = array<i64: 1, 4, 8, 8>}, {transform_indices = @transform_3, window_bounds = array<i64: 1, 4, 8, 8>}, {transform_indices = @transform_4, window_bounds = array<i64: 1, 4, 8, 8>}]} {
    %c0 = arith.constant 0 : index
    %c0_0 = arith.constant 0 : index
    %c0_1 = arith.constant 0 : index
    %c0_2 = arith.constant 0 : index
    %0 = vector.load %arg1[%c0, %c0_0, %c0_1, %c0_2] : memref<1x4x8x8xf32, #tpu.memory_space<vmem>>, vector<1x4x8x8xf32>
    %1 = vector.shape_cast %0 : vector<1x4x8x8xf32> to vector<4x8x8xf32>
    %cst = arith.constant 0.353553385 : f32
    %2 = vector.broadcast %cst : f32 to vector<4x8x8xf32>
    %3 = arith.mulf %1, %2 : vector<4x8x8xf32>
    %4 = arith.truncf %3 : vector<4x8x8xf32> to vector<4x8x8xbf16>
    %c0_3 = arith.constant 0 : index
    %c0_4 = arith.constant 0 : index
    %c0_5 = arith.constant 0 : index
    %c0_6 = arith.constant 0 : index
    %5 = vector.load %arg2[%c0_3, %c0_4, %c0_5, %c0_6] : memref<1x4x8x8xf32, #tpu.memory_space<vmem>>, vector<1x4x8x8xf32>
    %6 = vector.shape_cast %5 : vector<1x4x8x8xf32> to vector<4x8x8xf32>
    %7 = arith.truncf %6 : vector<4x8x8xf32> to vector<4x8x8xbf16>
    %c0_7 = arith.constant 0 : index
    %c0_8 = arith.constant 0 : index
    %c0_9 = arith.constant 0 : index
    %c0_10 = arith.constant 0 : index
    %8 = vector.load %arg3[%c0_7, %c0_8, %c0_9, %c0_10] : memref<1x4x8x8xf32, #tpu.memory_space<vmem>>, vector<1x4x8x8xf32>
    %9 = vector.shape_cast %8 : vector<1x4x8x8xf32> to vector<4x8x8xf32>
    %10 = arith.truncf %9 : vector<4x8x8xf32> to vector<4x8x8xbf16>
    "tpu.trace_start"() <{level = 10 : i32, message = "hqd,hkd->hqk"}> : () -> ()
    %cst_11 = arith.constant dense<0.000000e+00> : vector<4x8x8xf32>
    %11 = tpu.matmul %4, %7, %cst_11 {dimension_numbers = #tpu.dot_dimension_numbers<[2], [2], [1], [1], [0, 0, 0, 1, 1, 1], [0], [0]>} : vector<4x8x8xbf16>, vector<4x8x8xbf16>, vector<4x8x8xf32> -> vector<4x8x8xf32>
    "tpu.trace_stop"() : () -> ()
    %cst_12 = arith.constant dense<0xFF800000> : vector<4x8xf32>
    %12 = vector.multi_reduction <maximumf>, %11, %cst_12 [2] : vector<4x8x8xf32> to vector<4x8xf32>
    %13 = vector.shape_cast %12 : vector<4x8xf32> to vector<4x8x1xf32>
    %14 = vector.broadcast %13 : vector<4x8x1xf32> to vector<4x8x8xf32>
    %15 = arith.subf %11, %14 : vector<4x8x8xf32>
    %16 = math.exp %15 : vector<4x8x8xf32>
    %cst_13 = arith.constant dense<0.000000e+00> : vector<4x8xf32>
    %17 = vector.multi_reduction <add>, %16, %cst_13 [2] : vector<4x8x8xf32> to vector<4x8xf32>
    %18 = vector.shape_cast %17 : vector<4x8xf32> to vector<4x8x1xf32>
    %19 = tpu.reciprocal %18 {approx = true} : vector<4x8x1xf32> -> vector<4x8x1xf32>
    %20 = vector.broadcast %19 : vector<4x8x1xf32> to vector<4x8x8xf32>
    %21 = arith.mulf %16, %20 : vector<4x8x8xf32>
    %c0_14 = arith.constant 0 : index
    %c0_15 = arith.constant 0 : index
    %c0_16 = arith.constant 0 : index
    %c0_17 = arith.constant 0 : index
    %22 = vector.load %arg4[%c0_14, %c0_15, %c0_16, %c0_17] : memref<1x4x8x8xf32, #tpu.memory_space<vmem>>, vector<1x4x8x8xf32>
    %23 = vector.shape_cast %22 : vector<1x4x8x8xf32> to vector<4x8x8xf32>
    %24 = vector.shape_cast %21 : vector<4x8x8xf32> to vector<1x4x8x8xf32>
    tpu.vector_store %arg4[%c0_14, %c0_15, %c0_16, %c0_17], %24 {strides = array<i32>} : memref<1x4x8x8xf32, #tpu.memory_space<vmem>>, vector<1x4x8x8xf32>,
    %25 = arith.truncf %21 : vector<4x8x8xf32> to vector<4x8x8xbf16>
    "tpu.trace_start"() <{level = 10 : i32, message = "hqk,hkd->hqd"}> : () -> ()
    %cst_18 = arith.constant dense<0.000000e+00> : vector<4x8x8xf32>
    %26 = tpu.matmul %25, %10, %cst_18 {dimension_numbers = #tpu.dot_dimension_numbers<[2], [1], [1], [2], [0, 0, 0, 1, 1, 2], [0], [0]>} : vector<4x8x8xbf16>, vector<4x8x8xbf16>, vector<4x8x8xf32> -> vector<4x8x8xf32>
    "tpu.trace_stop"() : () -> ()
    %c0_19 = arith.constant 0 : index
    %c0_20 = arith.constant 0 : index
    %c0_21 = arith.constant 0 : index
    %c0_22 = arith.constant 0 : index
    %27 = vector.load %arg5[%c0_19, %c0_20, %c0_21, %c0_22] : memref<1x4x8x8xf32, #tpu.memory_space<vmem>>, vector<1x4x8x8xf32>
    %28 = vector.shape_cast %27 : vector<1x4x8x8xf32> to vector<4x8x8xf32>
    %29 = vector.shape_cast %26 : vector<4x8x8xf32> to vector<1x4x8x8xf32>
    tpu.vector_store %arg5[%c0_19, %c0_20, %c0_21, %c0_22], %29 {strides = array<i32>} : memref<1x4x8x8xf32, #tpu.memory_space<vmem>>, vector<1x4x8x8xf32>,
    return
  }
  func.func @transform_0(%arg0: i32) -> (i32, i32, i32, i32) {
    %c0_i32 = arith.constant 0 : i32
    %c0_i32_0 = arith.constant 0 : i32
    %c0_i32_1 = arith.constant 0 : i32
    %c0_i32_2 = arith.constant 0 : i32
    return %arg0, %c0_i32, %c0_i32_0, %c0_i32_1 : i32, i32, i32, i32
  }
  func.func @transform_1(%arg0: i32) -> (i32, i32, i32, i32) {
    %c0_i32 = arith.constant 0 : i32
    %c0_i32_0 = arith.constant 0 : i32
    %c0_i32_1 = arith.constant 0 : i32
    %c0_i32_2 = arith.constant 0 : i32
    return %arg0, %c0_i32, %c0_i32_0, %c0_i32_1 : i32, i32, i32, i32
  }
  func.func @transform_2(%arg0: i32) -> (i32, i32, i32, i32) {
    %c0_i32 = arith.constant 0 : i32
    %c0_i32_0 = arith.constant 0 : i32
    %c0_i32_1 = arith.constant 0 : i32
    %c0_i32_2 = arith.constant 0 : i32
    return %arg0, %c0_i32, %c0_i32_0, %c0_i32_1 : i32, i32, i32, i32
  }
  func.func @transform_3(%arg0: i32) -> (i32, i32, i32, i32) {
    %c0_i32 = arith.constant 0 : i32
    %c0_i32_0 = arith.constant 0 : i32
    %c0_i32_1 = arith.constant 0 : i32
    %c0_i32_2 = arith.constant 0 : i32
    return %arg0, %c0_i32, %c0_i32_0, %c0_i32_1 : i32, i32, i32, i32
  }
  func.func @transform_4(%arg0: i32) -> (i32, i32, i32, i32) {
    %c0_i32 = arith.constant 0 : i32
    %c0_i32_0 = arith.constant 0 : i32
    %c0_i32_1 = arith.constant 0 : i32
    %c0_i32_2 = arith.constant 0 : i32
    return %arg0, %c0_i32, %c0_i32_0, %c0_i32_1 : i32, i32, i32, i32
  }
}

</mosaic_0001>

<llo_original>
// kernel: multi_head_attention.5
$region0: #{multi_head_attention.5}
  #allocation0 [shape = 'u32[]', space=smem, size = 0x4, offset = 0x4, fixed_abs, tag = 'smem constant byte address 0x4 - core index']
  #allocation1 [shape = 'u32[144,128]{1,0:T(1,128)}', space=vmem, size = 0x12000, scoped, tag = 'internal scratch']
  %s0 = inlined_call_operand.vmem [shape: f32[16,32], index: 0, kind: input, shape index: {}]
  %s1 = inlined_call_operand.vmem [shape: bf16[32,32], index: 1, kind: input, shape index: {}]
  %s2 = inlined_call_operand.vmem [shape: f32[1,32], index: 2, kind: input, shape index: {}]
  %s3 = inlined_call_operand.hbm [shape: f32[16,32], index: 3, kind: output, shape index: {}]
  %s4 = sld [smem:[#allocation0]]
  $region22: #{multi_head_attention.5} parent=0
    _
  %s6 = ssub.s32 1, %s4
  %s7 = scalar_select 0, %s6, %s4
  $region1: #{multi_head_attention.5} parent=0
    #allocation2 [shape = 'u8[8192]{0}', space=vmem, size = 0x2000, scoped, tag = 'output window, operand 0, single buffered']
    #allocation3 [shape = 's32[1]{0}', space=sflag, size = 0x4, scoped, tag = 'scoped memory for multi_head_attention.5']
    %8 = vsyncpa [#allocation3], 0
    // Predicated region
    $region2: #{multi_head_attention.5} parent=1 // pred_check
      _
    $region3: #{multi_head_attention.5} parent=1 // pred_check_branch
      %10 = sbr.rel (0) target = $region5
    $region4: #{multi_head_attention.5} parent=1 // pred_region
      _
    $region5: #{multi_head_attention.5} parent=1 // pred_fallthru
      _
    // Predicated region
    $region6: #{multi_head_attention.5} parent=1 // pred_check
      _
    $region7: #{multi_head_attention.5} parent=1 // pred_check_branch
      %12 = sbr.rel (0) target = $region9
    $region8: #{multi_head_attention.5} parent=1 // pred_region
      _
    $region9: #{multi_head_attention.5} parent=1 // pred_fallthru
      _
    // Predicated region
    $region10: #{multi_head_attention.5} parent=1 // pred_check
      _
    $region11: #{multi_head_attention.5} parent=1 // pred_check_branch
      %14 = sbr.rel (0) target = $region13
    $region12: #{multi_head_attention.5} parent=1 // pred_region
      _
    $region13: #{multi_head_attention.5} parent=1 // pred_fallthru
      _
    %v16 = vld [vmem:[%s0] sm:$0xff]
    %v17 = vld [vmem:[%s0 + $0x8] sm:$0xff]
    %v18 = vpack.c.bf16 %v17, %v16
    %v19 = vld [vmem:[%s1] sm:$0xf]
    %v20 = vld [vmem:[%s1 + $0x4] sm:$0xf]
    %v21 = vld [vmem:[%s1 + $0x8] sm:$0xf]
    %v22 = vld [vmem:[%s1 + $0xc] sm:$0xf]
    %v23 = vld [vmem:[%s2] sm:$0x1]
    %v25 = vlaneseq
    %v26 = vshrl.u32 %v25, 7
    %v27 = vsub.s32 0, %v26
    %v28 = vrot.slane %v23, %v27
    %v34 = vunpack.c.l.b16 %v19
    %v35 = vunpack.c.l.b16 %v20
    %v36 = vunpack.c.l.b16 %v21
    %v37 = vunpack.c.l.b16 %v22
    %v38 = vpack.c.b16 %v35, %v34
    %v39 = vpack.c.b16 %v37, %v36
    %vm42 = vcmask 261120
    %v44 = vsel %vm42, %v18, 0
    %46 = vmatprep.subr.bf16.mxu0 0
    %47 = vmatpush1.bf16.msra.mxu0 %v38
    %48 = vmatprep.subr.bf16.mxu0 0
    %49 = vmatpush1.bf16.msra.mxu0 %v39
    %50 = vmatprep.subr.bf16.mxu0 0
    %51 = vmatpush1.bf16.msra.mxu0 0
    %52 = vmatprep.subr.bf16.mxu0 0
    %53 = vmatpush1.bf16.msra.mxu0 0
    %54 = vmatprep.subr.bf16.mxu0 0
    %55 = vmatpush1.bf16.msra.mxu0 0
    %56 = vmatprep.subr.bf16.mxu0 0
    %57 = vmatpush1.bf16.msra.mxu0 0
    %58 = vmatprep.subr.bf16.mxu0 0
    %59 = vmatpush1.bf16.msra.mxu0 0
    %60 = vmatprep.subr.bf16.mxu0 0
    %61 = vmatpush1.bf16.msra.mxu0 0
    %62 = vmatprep.subr.bf16.mxu0 0
    %63 = vmatpush1.bf16.msra.mxu0 0
    %64 = vmatprep.subr.bf16.mxu0 0
    %65 = vmatpush1.bf16.msra.mxu0 0
    %66 = vmatprep.subr.bf16.mxu0 0
    %67 = vmatpush1.bf16.msra.mxu0 0
    %68 = vmatprep.subr.bf16.mxu0 0
    %69 = vmatpush1.bf16.msra.mxu0 0
    %70 = vmatprep.subr.bf16.mxu0 0
    %71 = vmatpush1.bf16.msra.mxu0 0
    %72 = vmatprep.subr.bf16.mxu0 0
    %73 = vmatpush1.bf16.msra.mxu0 0
    %74 = vmatprep.subr.bf16.mxu0 0
    %75 = vmatpush1.bf16.msra.mxu0 0
    %76 = vmatprep.subr.bf16.mxu0 0
    %77 = vmatpush1.bf16.msra.mxu0 0
    %78 = vmatprep.mubr.bf16.mxu0 0
    %79 = vmatmul.mubr.bf16.gmra.mrb[0].mxu0 %v44
    %v80 = vpop.f32.mrb[0].mxu0
    %v81 = vadd.f32 %v28, %v80
    %v82 = vpop.f32.mrb[0].mxu0
    %v83 = vpop.f32.mrb[0].mxu0
    %v84 = vadd.f32 %v28, %v83
    %v85 = vpop.f32.mrb[0].mxu0
    %86 = vdwg.mxu0
    %87 = vst.msk [vmem:[#allocation2] sm:$0xff] %vm42, %v81
    %88 = vst.msk [vmem:[#allocation2 + $0x8] sm:$0xff] %vm42, %v84
    // Predicated region
    $region14: #{multi_head_attention.5} parent=1 // pred_check
      _
    $region15: #{multi_head_attention.5} parent=1 // pred_check_branch
      %90 = sbr.rel (0) target = $region17
    $region16: #{multi_head_attention.5} parent=1 // pred_region
      %s92 = ssub.s32 256, 256
      %93 = vsyncadd [#allocation3], %s92
      %s94 = sshll.u32 [#allocation2], 4
      %s95 = int_to_ptr.vmem [resolvable:$true] %s94
      %100 = dma.vmem_to_hbm [thread:$0]  %s95, 256, %s3, [#allocation3], 128, 128, 8
    $region17: #{multi_head_attention.5} parent=1 // pred_fallthru
      _
    // Predicated region
    $region18: #{multi_head_attention.5} parent=1 // pred_check
      _
    $region19: #{multi_head_attention.5} parent=1 // pred_check_branch
      %102 = sbr.rel (0) target = $region21
    $region20: #{multi_head_attention.5} parent=1 // pred_region
      %103 = dma.done [#allocation3], 256
    $region21: #{multi_head_attention.5} parent=1 // pred_fallthru
      _
    %104 = vsyncpa [#allocation3], 1

// kernel: multi_head_attention.3
$region0: #{multi_head_attention.3}
  #allocation0 [shape = 'u32[]', space=smem, size = 0x4, offset = 0x4, fixed_abs, tag = 'smem constant byte address 0x4 - core index']
  #allocation1 [shape = 'u32[144,128]{1,0:T(1,128)}', space=vmem, size = 0x12000, scoped, tag = 'internal scratch']
  %s0 = inlined_call_operand.vmem [shape: f32[16,32], index: 0, kind: input, shape index: {}]
  %s1 = inlined_call_operand.vmem [shape: f32[16,32], index: 1, kind: input, shape index: {}]
  %s2 = inlined_call_operand.vmem [shape: f32[16,32], index: 2, kind: input, shape index: {}]
  %s3 = inlined_call_operand.vmem [shape: bf16[32,32], index: 3, kind: input, shape index: {}]
  %s4 = inlined_call_operand.vmem [shape: bf16[32,32], index: 4, kind: input, shape index: {}]
  %s5 = inlined_call_operand.vmem [shape: bf16[32,32], index: 5, kind: input, shape index: {}]
  %s6 = inlined_call_operand.vmem [shape: f32[1,32], index: 6, kind: input, shape index: {}]
  %s7 = inlined_call_operand.vmem [shape: f32[1,32], index: 7, kind: input, shape index: {}]
  %s8 = inlined_call_operand.vmem [shape: f32[1,32], index: 8, kind: input, shape index: {}]
  %s9 = inlined_call_operand.vmem [shape: f32[16,32], index: 9, kind: output, shape index: {0}]
  %s10 = inlined_call_operand.vmem [shape: f32[16,32], index: 10, kind: output, shape index: {1}]
  %s11 = inlined_call_operand.vmem [shape: f32[16,32], index: 11, kind: output, shape index: {2}]
  %12 = xla_tuple %s9, %s10, %s11
  %s13 = sld [smem:[#allocation0]]
  $region62: #{multi_head_attention.3} parent=0
    _
  %s15 = ssub.s32 1, %s13
  %s16 = scalar_select 0, %s15, %s13
  // Predicated region
  $region2: #{multi_head_attention.3} parent=0 // pred_check
    _
  $region3: #{multi_head_attention.3} parent=0 // pred_check_branch
    %18 = sbr.rel (0) target = $region5
  $region4: #{multi_head_attention.3} parent=0 // pred_region
    _
  $region5: #{multi_head_attention.3} parent=0 // pred_fallthru
    _
  // Predicated region
  $region6: #{multi_head_attention.3} parent=0 // pred_check
    _
  $region7: #{multi_head_attention.3} parent=0 // pred_check_branch
    %20 = sbr.rel (0) target = $region9
  $region8: #{multi_head_attention.3} parent=0 // pred_region
    _
  $region9: #{multi_head_attention.3} parent=0 // pred_fallthru
    _
  // Predicated region
  $region10: #{multi_head_attention.3} parent=0 // pred_check
    _
  $region11: #{multi_head_attention.3} parent=0 // pred_check_branch
    %22 = sbr.rel (0) target = $region13
  $region12: #{multi_head_attention.3} parent=0 // pred_region
    _
  $region13: #{multi_head_attention.3} parent=0 // pred_fallthru
    _
  // Predicated region
  $region14: #{multi_head_attention.3} parent=0 // pred_check
    _
  $region15: #{multi_head_attention.3} parent=0 // pred_check_branch
    %24 = sbr.rel (0) target = $region17
  $region16: #{multi_head_attention.3} parent=0 // pred_region
    _
  $region17: #{multi_head_attention.3} parent=0 // pred_fallthru
    _
  // Predicated region
  $region18: #{multi_head_attention.3} parent=0 // pred_check
    _
  $region19: #{multi_head_attention.3} parent=0 // pred_check_branch
    %26 = sbr.rel (0) target = $region21
  $region20: #{multi_head_attention.3} parent=0 // pred_region
    _
  $region21: #{multi_head_attention.3} parent=0 // pred_fallthru
    _
  // Predicated region
  $region22: #{multi_head_attention.3} parent=0 // pred_check
    _
  $region23: #{multi_head_attention.3} parent=0 // pred_check_branch
    %28 = sbr.rel (0) target = $region25
  $region24: #{multi_head_attention.3} parent=0 // pred_region
    _
  $region25: #{multi_head_attention.3} parent=0 // pred_fallthru
    _
  // Predicated region
  $region26: #{multi_head_attention.3} parent=0 // pred_check
    _
  $region27: #{multi_head_attention.3} parent=0 // pred_check_branch
    %30 = sbr.rel (0) target = $region29
  $region28: #{multi_head_attention.3} parent=0 // pred_region
    _
  $region29: #{multi_head_attention.3} parent=0 // pred_fallthru
    _
  // Predicated region
  $region30: #{multi_head_attention.3} parent=0 // pred_check
    _
  $region31: #{multi_head_attention.3} parent=0 // pred_check_branch
    %32 = sbr.rel (0) target = $region33
  $region32: #{multi_head_attention.3} parent=0 // pred_region
    _
  $region33: #{multi_head_attention.3} parent=0 // pred_fallthru
    _
  // Predicated region
  $region34: #{multi_head_attention.3} parent=0 // pred_check
    _
  $region35: #{multi_head_attention.3} parent=0 // pred_check_branch
    %34 = sbr.rel (0) target = $region37
  $region36: #{multi_head_attention.3} parent=0 // pred_region
    _
  $region37: #{multi_head_attention.3} parent=0 // pred_fallthru
    _
  %v36 = vld [vmem:[%s0] sm:$0xff]
  %v37 = vld [vmem:[%s0 + $0x8] sm:$0xff]
  %v38 = vpack.c.bf16 %v37, %v36
  %v39 = vld [vmem:[%s3] sm:$0xf]
  %v40 = vld [vmem:[%s3 + $0x4] sm:$0xf]
  %v41 = vld [vmem:[%s3 + $0x8] sm:$0xf]
  %v42 = vld [vmem:[%s3 + $0xc] sm:$0xf]
  %v43 = vld [vmem:[%s6] sm:$0x1]
  %v45 = vlaneseq
  %v46 = vshrl.u32 %v45, 7
  %v47 = vsub.s32 0, %v46
  %v48 = vrot.slane %v43, %v47
  %v54 = vunpack.c.l.b16 %v39
  %v55 = vunpack.c.l.b16 %v40
  %v56 = vunpack.c.l.b16 %v41
  %v57 = vunpack.c.l.b16 %v42
  %v58 = vpack.c.b16 %v55, %v54
  %v59 = vpack.c.b16 %v57, %v56
  %vm62 = vcmask 261120
  %v64 = vsel %vm62, %v38, 0
  %66 = vmatprep.subr.bf16.mxu0 0
  %67 = vmatpush1.bf16.msra.mxu0 %v58
  %68 = vmatprep.subr.bf16.mxu0 0
  %69 = vmatpush1.bf16.msra.mxu0 %v59
  %70 = vmatprep.subr.bf16.mxu0 0
  %71 = vmatpush1.bf16.msra.mxu0 0
  %72 = vmatprep.subr.bf16.mxu0 0
  %73 = vmatpush1.bf16.msra.mxu0 0
  %74 = vmatprep.subr.bf16.mxu0 0
  %75 = vmatpush1.bf16.msra.mxu0 0
  %76 = vmatprep.subr.bf16.mxu0 0
  %77 = vmatpush1.bf16.msra.mxu0 0
  %78 = vmatprep.subr.bf16.mxu0 0
  %79 = vmatpush1.bf16.msra.mxu0 0
  %80 = vmatprep.subr.bf16.mxu0 0
  %81 = vmatpush1.bf16.msra.mxu0 0
  %82 = vmatprep.subr.bf16.mxu0 0
  %83 = vmatpush1.bf16.msra.mxu0 0
  %84 = vmatprep.subr.bf16.mxu0 0
  %85 = vmatpush1.bf16.msra.mxu0 0
  %86 = vmatprep.subr.bf16.mxu0 0
  %87 = vmatpush1.bf16.msra.mxu0 0
  %88 = vmatprep.subr.bf16.mxu0 0
  %89 = vmatpush1.bf16.msra.mxu0 0
  %90 = vmatprep.subr.bf16.mxu0 0
  %91 = vmatpush1.bf16.msra.mxu0 0
  %92 = vmatprep.subr.bf16.mxu0 0
  %93 = vmatpush1.bf16.msra.mxu0 0
  %94 = vmatprep.subr.bf16.mxu0 0
  %95 = vmatpush1.bf16.msra.mxu0 0
  %96 = vmatprep.subr.bf16.mxu0 0
  %97 = vmatpush1.bf16.msra.mxu0 0
  %98 = vmatprep.mubr.bf16.mxu0 0
  %99 = vmatmul.mubr.bf16.gmra.mrb[0].mxu0 %v64
  %v100 = vpop.f32.mrb[0].mxu0
  %v101 = vadd.f32 %v48, %v100
  %v102 = vpop.f32.mrb[0].mxu0
  %v103 = vpop.f32.mrb[0].mxu0
  %v104 = vadd.f32 %v48, %v103
  %v105 = vpop.f32.mrb[0].mxu0
  %106 = vdwg.mxu0
  %107 = vst.msk [vmem:[%s9] sm:$0xff] %vm62, %v101
  %108 = vst.msk [vmem:[%s9 + $0x8] sm:$0xff] %vm62, %v104
  %v109 = vld [vmem:[%s1] sm:$0xff]
  %v110 = vld [vmem:[%s1 + $0x8] sm:$0xff]
  %v111 = vpack.c.bf16 %v110, %v109
  %v112 = vld [vmem:[%s4] sm:$0xf]
  %v113 = vld [vmem:[%s4 + $0x4] sm:$0xf]
  %v114 = vld [vmem:[%s4 + $0x8] sm:$0xf]
  %v115 = vld [vmem:[%s4 + $0xc] sm:$0xf]
  %v116 = vld [vmem:[%s7] sm:$0x1]
  %v118 = vlaneseq
  %v119 = vshrl.u32 %v118, 7
  %v120 = vsub.s32 0, %v119
  %v121 = vrot.slane %v116, %v120
  %v127 = vunpack.c.l.b16 %v112
  %v128 = vunpack.c.l.b16 %v113
  %v129 = vunpack.c.l.b16 %v114
  %v130 = vunpack.c.l.b16 %v115
  %v131 = vpack.c.b16 %v128, %v127
  %v132 = vpack.c.b16 %v130, %v129
  %v136 = vsel %vm62, %v111, 0
  %138 = vmatprep.subr.bf16.mxu0 0
  %139 = vmatpush1.bf16.msra.mxu0 %v131
  %140 = vmatprep.subr.bf16.mxu0 0
  %141 = vmatpush1.bf16.msra.mxu0 %v132
  %142 = vmatprep.subr.bf16.mxu0 0
  %143 = vmatpush1.bf16.msra.mxu0 0
  %144 = vmatprep.subr.bf16.mxu0 0
  %145 = vmatpush1.bf16.msra.mxu0 0
  %146 = vmatprep.subr.bf16.mxu0 0
  %147 = vmatpush1.bf16.msra.mxu0 0
  %148 = vmatprep.subr.bf16.mxu0 0
  %149 = vmatpush1.bf16.msra.mxu0 0
  %150 = vmatprep.subr.bf16.mxu0 0
  %151 = vmatpush1.bf16.msra.mxu0 0
  %152 = vmatprep.subr.bf16.mxu0 0
  %153 = vmatpush1.bf16.msra.mxu0 0
  %154 = vmatprep.subr.bf16.mxu0 0
  %155 = vmatpush1.bf16.msra.mxu0 0
  %156 = vmatprep.subr.bf16.mxu0 0
  %157 = vmatpush1.bf16.msra.mxu0 0
  %158 = vmatprep.subr.bf16.mxu0 0
  %159 = vmatpush1.bf16.msra.mxu0 0
  %160 = vmatprep.subr.bf16.mxu0 0
  %161 = vmatpush1.bf16.msra.mxu0 0
  %162 = vmatprep.subr.bf16.mxu0 0
  %163 = vmatpush1.bf16.msra.mxu0 0
  %164 = vmatprep.subr.bf16.mxu0 0
  %165 = vmatpush1.bf16.msra.mxu0 0
  %166 = vmatprep.subr.bf16.mxu0 0
  %167 = vmatpush1.bf16.msra.mxu0 0
  %168 = vmatprep.subr.bf16.mxu0 0
  %169 = vmatpush1.bf16.msra.mxu0 0
  %170 = vmatprep.mubr.bf16.mxu0 0
  %171 = vmatmul.mubr.bf16.gmra.mrb[0].mxu0 %v136
  %v172 = vpop.f32.mrb[0].mxu0
  %v173 = vadd.f32 %v121, %v172
  %v174 = vpop.f32.mrb[0].mxu0
  %v175 = vpop.f32.mrb[0].mxu0
  %v176 = vadd.f32 %v121, %v175
  %v177 = vpop.f32.mrb[0].mxu0
  %178 = vdwg.mxu0
  %179 = vst.msk [vmem:[%s10] sm:$0xff] %vm62, %v173
  %180 = vst.msk [vmem:[%s10 + $0x8] sm:$0xff] %vm62, %v176
  %v181 = vld [vmem:[%s2] sm:$0xff]
  %v182 = vld [vmem:[%s2 + $0x8] sm:$0xff]
  %v183 = vpack.c.bf16 %v182, %v181
  %v184 = vld [vmem:[%s5] sm:$0xf]
  %v185 = vld [vmem:[%s5 + $0x4] sm:$0xf]
  %v186 = vld [vmem:[%s5 + $0x8] sm:$0xf]
  %v187 = vld [vmem:[%s5 + $0xc] sm:$0xf]
  %v188 = vld [vmem:[%s8] sm:$0x1]
  %v190 = vlaneseq
  %v191 = vshrl.u32 %v190, 7
  %v192 = vsub.s32 0, %v191
  %v193 = vrot.slane %v188, %v192
  %v199 = vunpack.c.l.b16 %v184
  %v200 = vunpack.c.l.b16 %v185
  %v201 = vunpack.c.l.b16 %v186
  %v202 = vunpack.c.l.b16 %v187
  %v203 = vpack.c.b16 %v200, %v199
  %v204 = vpack.c.b16 %v202, %v201
  %v208 = vsel %vm62, %v183, 0
  %210 = vmatprep.subr.bf16.mxu0 0
  %211 = vmatpush1.bf16.msra.mxu0 %v203
  %212 = vmatprep.subr.bf16.mxu0 0
  %213 = vmatpush1.bf16.msra.mxu0 %v204
  %214 = vmatprep.subr.bf16.mxu0 0
  %215 = vmatpush1.bf16.msra.mxu0 0
  %216 = vmatprep.subr.bf16.mxu0 0
  %217 = vmatpush1.bf16.msra.mxu0 0
  %218 = vmatprep.subr.bf16.mxu0 0
  %219 = vmatpush1.bf16.msra.mxu0 0
  %220 = vmatprep.subr.bf16.mxu0 0
  %221 = vmatpush1.bf16.msra.mxu0 0
  %222 = vmatprep.subr.bf16.mxu0 0
  %223 = vmatpush1.bf16.msra.mxu0 0
  %224 = vmatprep.subr.bf16.mxu0 0
  %225 = vmatpush1.bf16.msra.mxu0 0
  %226 = vmatprep.subr.bf16.mxu0 0
  %227 = vmatpush1.bf16.msra.mxu0 0
  %228 = vmatprep.subr.bf16.mxu0 0
  %229 = vmatpush1.bf16.msra.mxu0 0
  %230 = vmatprep.subr.bf16.mxu0 0
  %231 = vmatpush1.bf16.msra.mxu0 0
  %232 = vmatprep.subr.bf16.mxu0 0
  %233 = vmatpush1.bf16.msra.mxu0 0
  %234 = vmatprep.subr.bf16.mxu0 0
  %235 = vmatpush1.bf16.msra.mxu0 0
  %236 = vmatprep.subr.bf16.mxu0 0
  %237 = vmatpush1.bf16.msra.mxu0 0
  %238 = vmatprep.subr.bf16.mxu0 0
  %239 = vmatpush1.bf16.msra.mxu0 0
  %240 = vmatprep.subr.bf16.mxu0 0
  %241 = vmatpush1.bf16.msra.mxu0 0
  %242 = vmatprep.mubr.bf16.mxu0 0
  %243 = vmatmul.mubr.bf16.gmra.mrb[0].mxu0 %v208
  %v244 = vpop.f32.mrb[0].mxu0
  %v245 = vadd.f32 %v193, %v244
  %v246 = vpop.f32.mrb[0].mxu0
  %v247 = vpop.f32.mrb[0].mxu0
  %v248 = vadd.f32 %v193, %v247
  %v249 = vpop.f32.mrb[0].mxu0
  %250 = vdwg.mxu0
  %251 = vst.msk [vmem:[%s11] sm:$0xff] %vm62, %v245
  %252 = vst.msk [vmem:[%s11 + $0x8] sm:$0xff] %vm62, %v248
  // Predicated region
  $region38: #{multi_head_attention.3} parent=0 // pred_check
    _
  $region39: #{multi_head_attention.3} parent=0 // pred_check_branch
    %254 = sbr.rel (0) target = $region41
  $region40: #{multi_head_attention.3} parent=0 // pred_region
    _
  $region41: #{multi_head_attention.3} parent=0 // pred_fallthru
    _
  // Predicated region
  $region42: #{multi_head_attention.3} parent=0 // pred_check
    _
  $region43: #{multi_head_attention.3} parent=0 // pred_check_branch
    %256 = sbr.rel (0) target = $region45
  $region44: #{multi_head_attention.3} parent=0 // pred_region
    _
  $region45: #{multi_head_attention.3} parent=0 // pred_fallthru
    _
  // Predicated region
  $region46: #{multi_head_attention.3} parent=0 // pred_check
    _
  $region47: #{multi_head_attention.3} parent=0 // pred_check_branch
    %258 = sbr.rel (0) target = $region49
  $region48: #{multi_head_attention.3} parent=0 // pred_region
    _
  $region49: #{multi_head_attention.3} parent=0 // pred_fallthru
    _
  // Predicated region
  $region50: #{multi_head_attention.3} parent=0 // pred_check
    _
  $region51: #{multi_head_attention.3} parent=0 // pred_check_branch
    %260 = sbr.rel (0) target = $region53
  $region52: #{multi_head_attention.3} parent=0 // pred_region
    _
  $region53: #{multi_head_attention.3} parent=0 // pred_fallthru
    _
  // Predicated region
  $region54: #{multi_head_attention.3} parent=0 // pred_check
    _
  $region55: #{multi_head_attention.3} parent=0 // pred_check_branch
    %262 = sbr.rel (0) target = $region57
  $region56: #{multi_head_attention.3} parent=0 // pred_region
    _
  $region57: #{multi_head_attention.3} parent=0 // pred_fallthru
    _
  // Predicated region
  $region58: #{multi_head_attention.3} parent=0 // pred_check
    _
  $region59: #{multi_head_attention.3} parent=0 // pred_check_branch
    %264 = sbr.rel (0) target = $region61
  $region60: #{multi_head_attention.3} parent=0 // pred_region
    _
  $region61: #{multi_head_attention.3} parent=0 // pred_fallthru
    _

// kernel: multi_head_attention.4
$region0: #{multi_head_attention.4}
  #allocation0 [shape = 'u32[]', space=smem, size = 0x4, offset = 0x4, fixed_abs, tag = 'smem constant byte address 0x4 - core index']
  #allocation1 [shape = 'u32[144,128]{1,0:T(1,128)}', space=vmem, size = 0x12000, scoped, tag = 'internal scratch']
  %s0 = inlined_call_operand.vmem [shape: f32[2,4,8,8], index: 0, kind: input, shape index: {}]
  %s1 = inlined_call_operand.vmem [shape: f32[2,4,8,8], index: 1, kind: input, shape index: {}]
  %s2 = inlined_call_operand.vmem [shape: f32[2,4,8,8], index: 2, kind: input, shape index: {}]
  %s3 = inlined_call_operand.hbm [shape: f32[2,4,8,8], index: 3, kind: output, shape index: {0}]
  %s4 = inlined_call_operand.vmem [shape: f32[2,4,8,8], index: 4, kind: output, shape index: {1}]
  %5 = xla_tuple %s3, %s4
  %s6 = sld [smem:[#allocation0]]
  $region53: #{multi_head_attention.4} parent=0
    _
  %s8 = ssub.s32 1, %s6
  %s9 = scalar_select 0, %s8, %s6
  $region1: #{multi_head_attention.4} parent=0
    #allocation2 [shape = 'u8[32768]{0}', space=vmem, size = 0x8000, scoped, tag = 'output window, operand 0']
    #allocation3 [shape = 's32[2]{0}', space=sflag, size = 0x8, scoped, tag = 'scoped memory for multi_head_attention.4']
    %10 = vsyncpa [#allocation3], 0
    %s11 = scalar_lea.sflag [#allocation3], 1
    %12 = vsyncpa %s11, 0
    loop: start=0, step=1, limit=4
    $region2: #{multi_head_attention.4} parent=1 // loop_pre_header
      _
    $region3: #{multi_head_attention.4} parent=1 // loop_header
      %s14 = sphi 0, %s18
      %p15 = scmp.ge.s32.totalorder %s14, 4
      %s24 = sphi 0, %s26
      %s27 = sphi 0, %s24
      %s28 = sphi 0, %s27
      %s44 = sphi 0, %s28
      %s50 = sphi 0, %s52
      %s53 = sphi 0, %s50
      %s54 = sphi 0, %s53
      %s70 = sphi 0, %s54
      %s76 = sphi 0, %s78
      %s79 = sphi 0, %s76
      %s80 = sphi 0, %s79
      %s96 = sphi 0, %s80
      %s102 = sphi 0, %s104
      %s105 = sphi 0, %s102
      %s106 = sphi 0, %s105
      %s122 = sphi 0, %s106
      %s128 = sphi 0, %s130
      %s131 = sphi 0, %s128
      %s132 = sphi 0, %s131
      %s148 = sphi 0, %s132
    $region4: #{multi_head_attention.4} parent=1 // loop_header_branch
      %17 = sbr.rel (%p15) target = $region8
    $region5: #{multi_head_attention.4} parent=1 // loop_body
      %s19 = ssub.s32 %s14, 1
      %s20 = ssub.s32 %s14, 2
      %s21 = sadd.s32 %s14, 1
      %s22 = ssub.s32 %s14, %s21
      %p23 = scmp.eq.s32.totalorder %s22, 0
      %s25 = sadd.s32 %s24, 1
      %s26 = scalar_select %p23, %s24, %s25
      %p29 = pneg %p23
      %p30 = scmp.eq.s32.totalorder %s14, 1
      %p31 = por %p29, %p30
      %p32 = scmp.ne.s32.totalorder %s24, %s27
      %p33 = scmp.eq.s32.totalorder %s14, 0
      %p34 = por %p32, %p33
      %p35 = scmp.ne.s32.totalorder %s24, %s27
      %p36 = scmp.eq.s32.totalorder %s19, 1
      %p37 = por %p35, %p36
      %p38 = scmp.ne.s32.totalorder %s27, %s28
      %p39 = scmp.eq.s32.totalorder %s19, 0
      %p40 = por %p38, %p39
      %p41 = scmp.ne.s32.totalorder %s27, %s28
      %p42 = scmp.eq.s32.totalorder %s20, 1
      %p43 = por %p41, %p42
      %p45 = scmp.ne.s32.totalorder %s28, %s44
      %p46 = scmp.eq.s32.totalorder %s20, 0
      %p47 = por %p45, %p46
      %s48 = ssub.s32 %s14, %s21
      %p49 = scmp.eq.s32.totalorder %s48, 0
      %s51 = sadd.s32 %s50, 1
      %s52 = scalar_select %p49, %s50, %s51
      %p55 = pneg %p49
      %p56 = scmp.eq.s32.totalorder %s14, 1
      %p57 = por %p55, %p56
      %p58 = scmp.ne.s32.totalorder %s50, %s53
      %p59 = scmp.eq.s32.totalorder %s14, 0
      %p60 = por %p58, %p59
      %p61 = scmp.ne.s32.totalorder %s50, %s53
      %p62 = scmp.eq.s32.totalorder %s19, 1
      %p63 = por %p61, %p62
      %p64 = scmp.ne.s32.totalorder %s53, %s54
      %p65 = scmp.eq.s32.totalorder %s19, 0
      %p66 = por %p64, %p65
      %p67 = scmp.ne.s32.totalorder %s53, %s54
      %p68 = scmp.eq.s32.totalorder %s20, 1
      %p69 = por %p67, %p68
      %p71 = scmp.ne.s32.totalorder %s54, %s70
      %p72 = scmp.eq.s32.totalorder %s20, 0
      %p73 = por %p71, %p72
      %s74 = ssub.s32 %s14, %s21
      %p75 = scmp.eq.s32.totalorder %s74, 0
      %s77 = sadd.s32 %s76, 1
      %s78 = scalar_select %p75, %s76, %s77
      %p81 = pneg %p75
      %p82 = scmp.eq.s32.totalorder %s14, 1
      %p83 = por %p81, %p82
      %p84 = scmp.ne.s32.totalorder %s76, %s79
      %p85 = scmp.eq.s32.totalorder %s14, 0
      %p86 = por %p84, %p85
      %p87 = scmp.ne.s32.totalorder %s76, %s79
      %p88 = scmp.eq.s32.totalorder %s19, 1
      %p89 = por %p87, %p88
      %p90 = scmp.ne.s32.totalorder %s79, %s80
      %p91 = scmp.eq.s32.totalorder %s19, 0
      %p92 = por %p90, %p91
      %p93 = scmp.ne.s32.totalorder %s79, %s80
      %p94 = scmp.eq.s32.totalorder %s20, 1
      %p95 = por %p93, %p94
      %p97 = scmp.ne.s32.totalorder %s80, %s96
      %p98 = scmp.eq.s32.totalorder %s20, 0
      %p99 = por %p97, %p98
      %s100 = ssub.s32 %s14, %s21
      %p101 = scmp.eq.s32.totalorder %s100, 0
      %s103 = sadd.s32 %s102, 1
      %s104 = scalar_select %p101, %s102, %s103
      %p107 = pneg %p101
      %p108 = scmp.eq.s32.totalorder %s14, 1
      %p109 = por %p107, %p108
      %p110 = scmp.ne.s32.totalorder %s102, %s105
      %p111 = scmp.eq.s32.totalorder %s14, 0
      %p112 = por %p110, %p111
      %p113 = scmp.ne.s32.totalorder %s102, %s105
      %p114 = scmp.eq.s32.totalorder %s19, 1
      %p115 = por %p113, %p114
      %p116 = scmp.ne.s32.totalorder %s105, %s106
      %p117 = scmp.eq.s32.totalorder %s19, 0
      %p118 = por %p116, %p117
      %p119 = scmp.ne.s32.totalorder %s105, %s106
      %p120 = scmp.eq.s32.totalorder %s20, 1
      %p121 = por %p119, %p120
      %p123 = scmp.ne.s32.totalorder %s106, %s122
      %p124 = scmp.eq.s32.totalorder %s20, 0
      %p125 = por %p123, %p124
      %s126 = ssub.s32 %s14, %s21
      %p127 = scmp.eq.s32.totalorder %s126, 0
      %s129 = sadd.s32 %s128, 1
      %s130 = scalar_select %p127, %s128, %s129
      %p133 = pneg %p127
      %p134 = scmp.eq.s32.totalorder %s14, 1
      %p135 = por %p133, %p134
      %p136 = scmp.ne.s32.totalorder %s128, %s131
      %p137 = scmp.eq.s32.totalorder %s14, 0
      %p138 = por %p136, %p137
      %p139 = scmp.ne.s32.totalorder %s128, %s131
      %p140 = scmp.eq.s32.totalorder %s19, 1
      %p141 = por %p139, %p140
      %p142 = scmp.ne.s32.totalorder %s131, %s132
      %p143 = scmp.eq.s32.totalorder %s19, 0
      %p144 = por %p142, %p143
      %p145 = scmp.ne.s32.totalorder %s131, %s132
      %p146 = scmp.eq.s32.totalorder %s20, 1
      %p147 = por %p145, %p146
      %p149 = scmp.ne.s32.totalorder %s132, %s148
      %p150 = scmp.eq.s32.totalorder %s20, 0
      %p151 = por %p149, %p150
      %p152 = scmp.le.s32.totalorder 1, %s14
      %p153 = scmp.lt.s32.totalorder %s14, 3
      %p154 = pnand %p152, %p153
      %p155 = pneg %p154
      // Predicated region
      $region9: #{multi_head_attention.4} parent=5 // pred_check
        _
      $region10: #{multi_head_attention.4} parent=5 // pred_check_branch
        %157 = sbr.rel (%p154) target = $region12
      $region11: #{multi_head_attention.4} parent=5 // pred_region
        %s158 = ssub.s32 %s14, 1
      $region12: #{multi_head_attention.4} parent=5 // pred_fallthru
        _
      %p159 = scmp.lt.s32.totalorder %s14, 2
      // Predicated region
      $region13: #{multi_head_attention.4} parent=5 // pred_check
        %p160 = pneg %p159
      $region14: #{multi_head_attention.4} parent=5 // pred_check_branch
        %162 = sbr.rel (%p160) target = $region16
      $region15: #{multi_head_attention.4} parent=5 // pred_region
        // Predicated region
        $region17: #{multi_head_attention.4} parent=15 // pred_check
          %p163 = pneg %p34
        $region18: #{multi_head_attention.4} parent=15 // pred_check_branch
          %165 = sbr.rel (%p163) target = $region20
        $region19: #{multi_head_attention.4} parent=15 // pred_region
          %p166 = scmp.lt.s32.totalorder %s14, 1
          %s167 = scalar_select %p166, %s14, 1
          %s168 = smul.addr %s167, 4
          %s169 = smul.addr %s168, 8
          %s170 = scalar_lea.vmem %s0, %s169
        $region20: #{multi_head_attention.4} parent=15 // pred_fallthru
          _
        // Predicated region
        $region21: #{multi_head_attention.4} parent=15 // pred_check
          %p171 = pneg %p60
        $region22: #{multi_head_attention.4} parent=15 // pred_check_branch
          %173 = sbr.rel (%p171) target = $region24
        $region23: #{multi_head_attention.4} parent=15 // pred_region
          %p174 = scmp.lt.s32.totalorder %s14, 1
          %s175 = scalar_select %p174, %s14, 1
          %s176 = smul.addr %s175, 4
          %s177 = smul.addr %s176, 8
          %s178 = scalar_lea.vmem %s1, %s177
        $region24: #{multi_head_attention.4} parent=15 // pred_fallthru
          _
        // Predicated region
        $region25: #{multi_head_attention.4} parent=15 // pred_check
          %p179 = pneg %p86
        $region26: #{multi_head_attention.4} parent=15 // pred_check_branch
          %181 = sbr.rel (%p179) target = $region28
        $region27: #{multi_head_attention.4} parent=15 // pred_region
          %p182 = scmp.lt.s32.totalorder %s14, 1
          %s183 = scalar_select %p182, %s14, 1
          %s184 = smul.addr %s183, 4
          %s185 = smul.addr %s184, 8
          %s186 = scalar_lea.vmem %s2, %s185
        $region28: #{multi_head_attention.4} parent=15 // pred_fallthru
          _
      $region16: #{multi_head_attention.4} parent=5 // pred_fallthru
        _
      %p187 = scmp.le.s32.totalorder 1, %s14
      %p188 = scmp.lt.s32.totalorder %s14, 3
      %p189 = pnand %p187, %p188
      %p190 = pneg %p189
      // Predicated region
      $region29: #{multi_head_attention.4} parent=5 // pred_check
        _
      $region30: #{multi_head_attention.4} parent=5 // pred_check_branch
        %192 = sbr.rel (%p189) target = $region32
      $region31: #{multi_head_attention.4} parent=5 // pred_region
        %s193 = ssub.s32 %s14, 1
        %p194 = scmp.lt.s32.totalorder %s19, 1
        %s195 = scalar_select %p194, %s19, 1
        %s196 = smul.addr %s195, 4
        %s197 = smul.addr %s196, 8
        %s198 = scalar_lea.vmem %s0, %s197
        %p199 = pneg %p40
        %p200 = pneg %p37
        %p201 = scmp.lt.s32.totalorder %s19, 1
        %s202 = scalar_select %p201, %s19, 1
        %s203 = smul.addr %s202, 4
        %s204 = smul.addr %s203, 8
        %s205 = scalar_lea.vmem %s1, %s204
        %p206 = pneg %p66
        %p207 = pneg %p63
        %p208 = scmp.lt.s32.totalorder %s19, 1
        %s209 = scalar_select %p208, %s19, 1
        %s210 = smul.addr %s209, 4
        %s211 = smul.addr %s210, 8
        %s212 = scalar_lea.vmem %s2, %s211
        %p213 = pneg %p92
        %p214 = pneg %p89
        %p215 = pneg %p118
        %p216 = pneg %p115
        %s217 = sand.u32 %s105, 1
        %s218 = scalar_lea.sflag [#allocation3], %s217
        %s219 = sand.u32 %s105, 1
        %s220 = smul.addr %s219, 32
        %s221 = scalar_lea.vmem [#allocation2], %s220
        %p222 = pneg %p144
        %p223 = pneg %p141
        %p224 = scmp.lt.s32.totalorder %s19, 1
        %s225 = scalar_select %p224, %s19, 1
        %s226 = smul.addr %s225, 4
        %s227 = smul.addr %s226, 8
        %s228 = scalar_lea.vmem %s4, %s227
        %p229 = scmp.lt.s32.totalorder %s19, 1
        %s230 = scalar_select %p229, %s19, 1
        %s231 = smul.addr %s230, 4
        %s232 = smul.addr %s231, 8
        %s233 = scalar_lea.vmem %s0, %s232
        %p234 = scmp.lt.s32.totalorder %s19, 1
        %s235 = scalar_select %p234, %s19, 1
        %s236 = smul.addr %s235, 4
        %s237 = smul.addr %s236, 8
        %s238 = scalar_lea.vmem %s1, %s237
        %p239 = scmp.lt.s32.totalorder %s19, 1
        %s240 = scalar_select %p239, %s19, 1
        %s241 = smul.addr %s240, 4
        %s242 = smul.addr %s241, 8
        %s243 = scalar_lea.vmem %s2, %s242
        %p244 = scmp.lt.s32.totalorder %s19, 1
        %s245 = scalar_select %p244, %s19, 1
        %s246 = smul.addr %s245, 4
        %s247 = smul.addr %s246, 8
        %s248 = scalar_lea.vmem %s4, %s247
        %v250 = vld [vmem:[%s233] sm:$0xff]
        %v251 = vld [vmem:[%s233 + $0x8] sm:$0xff]
        %v252 = vld [vmem:[%s233 + $0x10] sm:$0xff]
        %v253 = vld [vmem:[%s233 + $0x18] sm:$0xff]
        %v254 = vmul.f32 %v250, 0.35355338
        %v255 = vmul.f32 %v251, 0.35355338
        %v256 = vmul.f32 %v252, 0.35355338
        %v257 = vmul.f32 %v253, 0.35355338
        %v258 = vpack.c.bf16 %v254, %v254
        %v259 = vpack.c.bf16 %v255, %v255
        %v260 = vpack.c.bf16 %v256, %v256
        %v261 = vpack.c.bf16 %v257, %v257
        %v262 = vld [vmem:[%s238] sm:$0xff]
        %v263 = vld [vmem:[%s238 + $0x8] sm:$0xff]
        %v264 = vld [vmem:[%s238 + $0x10] sm:$0xff]
        %v265 = vld [vmem:[%s238 + $0x18] sm:$0xff]
        %v266 = vpack.c.bf16 %v262, %v262
        %v267 = vpack.c.bf16 %v263, %v263
        %v268 = vpack.c.bf16 %v264, %v264
        %v269 = vpack.c.bf16 %v265, %v265
        %v270 = vld [vmem:[%s243] sm:$0xff]
        %v271 = vld [vmem:[%s243 + $0x8] sm:$0xff]
        %v272 = vld [vmem:[%s243 + $0x10] sm:$0xff]
        %v273 = vld [vmem:[%s243 + $0x18] sm:$0xff]
        %v274 = vpack.c.bf16 %v270, %v270
        %v275 = vpack.c.bf16 %v271, %v271
        %v276 = vpack.c.bf16 %v272, %v272
        %v277 = vpack.c.bf16 %v273, %v273
        %vm278 = vcmask 64512
        %v280 = vsel %vm278, %v258, 0
        %v283 = vsel %vm278, %v266, 0
        %285 = vmatprep.subr.bf16.mxu0 0
        %286 = vmatpush1.bf16.xpose.msra.mxu0 %v283
        %287 = vmatprep.subr.bf16.mxu0 0
        %288 = vmatpush1.bf16.xpose.msra.mxu0 0
        %289 = vmatprep.subr.bf16.mxu0 0
        %290 = vmatpush1.bf16.xpose.msra.mxu0 0
        %291 = vmatprep.subr.bf16.mxu0 0
        %292 = vmatpush1.bf16.xpose.msra.mxu0 0
        %293 = vmatprep.subr.bf16.mxu0 0
        %294 = vmatpush1.bf16.xpose.msra.mxu0 0
        %295 = vmatprep.subr.bf16.mxu0 0
        %296 = vmatpush1.bf16.xpose.msra.mxu0 0
        %297 = vmatprep.subr.bf16.mxu0 0
        %298 = vmatpush1.bf16.xpose.msra.mxu0 0
        %299 = vmatprep.subr.bf16.mxu0 0
        %300 = vmatpush1.bf16.xpose.msra.mxu0 0
        %301 = vmatprep.subr.bf16.mxu0 0
        %302 = vmatpush1.bf16.xpose.msra.mxu0 0
        %303 = vmatprep.subr.bf16.mxu0 0
        %304 = vmatpush1.bf16.xpose.msra.mxu0 0
        %305 = vmatprep.subr.bf16.mxu0 0
        %306 = vmatpush1.bf16.xpose.msra.mxu0 0
        %307 = vmatprep.subr.bf16.mxu0 0
        %308 = vmatpush1.bf16.xpose.msra.mxu0 0
        %309 = vmatprep.subr.bf16.mxu0 0
        %310 = vmatpush1.bf16.xpose.msra.mxu0 0
        %311 = vmatprep.subr.bf16.mxu0 0
        %312 = vmatpush1.bf16.xpose.msra.mxu0 0
        %313 = vmatprep.subr.bf16.mxu0 0
        %314 = vmatpush1.bf16.xpose.msra.mxu0 0
        %315 = vmatprep.subr.bf16.mxu0 0
        %316 = vmatpush1.bf16.xpose.msra.mxu0 0
        %317 = vmatprep.mubr.bf16.mxu0 0
        %318 = vmatmul.mubr.bf16.gmra.mrb[0].mxu0 %v280
        %v319 = vpop.f32.mrb[0].mxu0
        %v320 = vadd.f32 0.0, %v319
        %v321 = vpop.f32.mrb[0].mxu0
        %v322 = vpop.f32.mrb[0].mxu0
        %v323 = vpop.f32.mrb[0].mxu0
        %324 = vdwg.mxu0
        %v326 = vsel %vm278, %v259, 0
        %v329 = vsel %vm278, %v267, 0
        %331 = vmatprep.subr.bf16.mxu0 0
        %332 = vmatpush1.bf16.xpose.msra.mxu0 %v329
        %333 = vmatprep.subr.bf16.mxu0 0
        %334 = vmatpush1.bf16.xpose.msra.mxu0 0
        %335 = vmatprep.subr.bf16.mxu0 0
        %336 = vmatpush1.bf16.xpose.msra.mxu0 0
        %337 = vmatprep.subr.bf16.mxu0 0
        %338 = vmatpush1.bf16.xpose.msra.mxu0 0
        %339 = vmatprep.subr.bf16.mxu0 0
        %340 = vmatpush1.bf16.xpose.msra.mxu0 0
        %341 = vmatprep.subr.bf16.mxu0 0
        %342 = vmatpush1.bf16.xpose.msra.mxu0 0
        %343 = vmatprep.subr.bf16.mxu0 0
        %344 = vmatpush1.bf16.xpose.msra.mxu0 0
        %345 = vmatprep.subr.bf16.mxu0 0
        %346 = vmatpush1.bf16.xpose.msra.mxu0 0
        %347 = vmatprep.subr.bf16.mxu0 0
        %348 = vmatpush1.bf16.xpose.msra.mxu0 0
        %349 = vmatprep.subr.bf16.mxu0 0
        %350 = vmatpush1.bf16.xpose.msra.mxu0 0
        %351 = vmatprep.subr.bf16.mxu0 0
        %352 = vmatpush1.bf16.xpose.msra.mxu0 0
        %353 = vmatprep.subr.bf16.mxu0 0
        %354 = vmatpush1.bf16.xpose.msra.mxu0 0
        %355 = vmatprep.subr.bf16.mxu0 0
        %356 = vmatpush1.bf16.xpose.msra.mxu0 0
        %357 = vmatprep.subr.bf16.mxu0 0
        %358 = vmatpush1.bf16.xpose.msra.mxu0 0
        %359 = vmatprep.subr.bf16.mxu0 0
        %360 = vmatpush1.bf16.xpose.msra.mxu0 0
        %361 = vmatprep.subr.bf16.mxu0 0
        %362 = vmatpush1.bf16.xpose.msra.mxu0 0
        %363 = vmatprep.mubr.bf16.mxu0 0
        %364 = vmatmul.mubr.bf16.gmra.mrb[0].mxu0 %v326
        %v365 = vpop.f32.mrb[0].mxu0
        %v366 = vadd.f32 0.0, %v365
        %v367 = vpop.f32.mrb[0].mxu0
        %v368 = vpop.f32.mrb[0].mxu0
        %v369 = vpop.f32.mrb[0].mxu0
        %370 = vdwg.mxu0
        %v372 = vsel %vm278, %v260, 0
        %v375 = vsel %vm278, %v268, 0
        %377 = vmatprep.subr.bf16.mxu0 0
        %378 = vmatpush1.bf16.xpose.msra.mxu0 %v375
        %379 = vmatprep.subr.bf16.mxu0 0
        %380 = vmatpush1.bf16.xpose.msra.mxu0 0
        %381 = vmatprep.subr.bf16.mxu0 0
        %382 = vmatpush1.bf16.xpose.msra.mxu0 0
        %383 = vmatprep.subr.bf16.mxu0 0
        %384 = vmatpush1.bf16.xpose.msra.mxu0 0
        %385 = vmatprep.subr.bf16.mxu0 0
        %386 = vmatpush1.bf16.xpose.msra.mxu0 0
        %387 = vmatprep.subr.bf16.mxu0 0
        %388 = vmatpush1.bf16.xpose.msra.mxu0 0
        %389 = vmatprep.subr.bf16.mxu0 0
        %390 = vmatpush1.bf16.xpose.msra.mxu0 0
        %391 = vmatprep.subr.bf16.mxu0 0
        %392 = vmatpush1.bf16.xpose.msra.mxu0 0
        %393 = vmatprep.subr.bf16.mxu0 0
        %394 = vmatpush1.bf16.xpose.msra.mxu0 0
        %395 = vmatprep.subr.bf16.mxu0 0
        %396 = vmatpush1.bf16.xpose.msra.mxu0 0
        %397 = vmatprep.subr.bf16.mxu0 0
        %398 = vmatpush1.bf16.xpose.msra.mxu0 0
        %399 = vmatprep.subr.bf16.mxu0 0
        %400 = vmatpush1.bf16.xpose.msra.mxu0 0
        %401 = vmatprep.subr.bf16.mxu0 0
        %402 = vmatpush1.bf16.xpose.msra.mxu0 0
        %403 = vmatprep.subr.bf16.mxu0 0
        %404 = vmatpush1.bf16.xpose.msra.mxu0 0
        %405 = vmatprep.subr.bf16.mxu0 0
        %406 = vmatpush1.bf16.xpose.msra.mxu0 0
        %407 = vmatprep.subr.bf16.mxu0 0
        %408 = vmatpush1.bf16.xpose.msra.mxu0 0
        %409 = vmatprep.mubr.bf16.mxu0 0
        %410 = vmatmul.mubr.bf16.gmra.mrb[0].mxu0 %v372
        %v411 = vpop.f32.mrb[0].mxu0
        %v412 = vadd.f32 0.0, %v411
        %v413 = vpop.f32.mrb[0].mxu0
        %v414 = vpop.f32.mrb[0].mxu0
        %v415 = vpop.f32.mrb[0].mxu0
        %416 = vdwg.mxu0
        %v418 = vsel %vm278, %v261, 0
        %v421 = vsel %vm278, %v269, 0
        %423 = vmatprep.subr.bf16.mxu0 0
        %424 = vmatpush1.bf16.xpose.msra.mxu0 %v421
        %425 = vmatprep.subr.bf16.mxu0 0
        %426 = vmatpush1.bf16.xpose.msra.mxu0 0
        %427 = vmatprep.subr.bf16.mxu0 0
        %428 = vmatpush1.bf16.xpose.msra.mxu0 0
        %429 = vmatprep.subr.bf16.mxu0 0
        %430 = vmatpush1.bf16.xpose.msra.mxu0 0
        %431 = vmatprep.subr.bf16.mxu0 0
        %432 = vmatpush1.bf16.xpose.msra.mxu0 0
        %433 = vmatprep.subr.bf16.mxu0 0
        %434 = vmatpush1.bf16.xpose.msra.mxu0 0
        %435 = vmatprep.subr.bf16.mxu0 0
        %436 = vmatpush1.bf16.xpose.msra.mxu0 0
        %437 = vmatprep.subr.bf16.mxu0 0
        %438 = vmatpush1.bf16.xpose.msra.mxu0 0
        %439 = vmatprep.subr.bf16.mxu0 0
        %440 = vmatpush1.bf16.xpose.msra.mxu0 0
        %441 = vmatprep.subr.bf16.mxu0 0
        %442 = vmatpush1.bf16.xpose.msra.mxu0 0
        %443 = vmatprep.subr.bf16.mxu0 0
        %444 = vmatpush1.bf16.xpose.msra.mxu0 0
        %445 = vmatprep.subr.bf16.mxu0 0
        %446 = vmatpush1.bf16.xpose.msra.mxu0 0
        %447 = vmatprep.subr.bf16.mxu0 0
        %448 = vmatpush1.bf16.xpose.msra.mxu0 0
        %449 = vmatprep.subr.bf16.mxu0 0
        %450 = vmatpush1.bf16.xpose.msra.mxu0 0
        %451 = vmatprep.subr.bf16.mxu0 0
        %452 = vmatpush1.bf16.xpose.msra.mxu0 0
        %453 = vmatprep.subr.bf16.mxu0 0
        %454 = vmatpush1.bf16.xpose.msra.mxu0 0
        %455 = vmatprep.mubr.bf16.mxu0 0
        %456 = vmatmul.mubr.bf16.gmra.mrb[0].mxu0 %v418
        %v457 = vpop.f32.mrb[0].mxu0
        %v458 = vadd.f32 0.0, %v457
        %v459 = vpop.f32.mrb[0].mxu0
        %v460 = vpop.f32.mrb[0].mxu0
        %v461 = vpop.f32.mrb[0].mxu0
        %462 = vdwg.mxu0
        %v463 = vsel %vm278, %v320, -inf
        %464 = vmax.xlane.f32.xlu0 %v463
        %v465 = vpop.xlane.xlu0 %464
        %v466 = vsel %vm278, %v366, -inf
        %467 = vmax.xlane.f32.xlu0 %v466
        %v468 = vpop.xlane.xlu0 %467
        %v469 = vsel %vm278, %v412, -inf
        %470 = vmax.xlane.f32.xlu0 %v469
        %v471 = vpop.xlane.xlu0 %470
        %v472 = vsel %vm278, %v458, -inf
        %473 = vmax.xlane.f32.xlu0 %v472
        %v474 = vpop.xlane.xlu0 %473
        %v475 = vsub.f32 %v320, %v465
        %v476 = vsub.f32 %v366, %v468
        %v477 = vsub.f32 %v412, %v471
        %v478 = vsub.f32 %v458, %v474
        %v479 = vmul.f32 %v475, 1.442695
        %v480 = vpow.pop %v479
        %v481 = vmul.f32 %v476, 1.442695
        %v482 = vpow.pop %v481
        %v483 = vmul.f32 %v477, 1.442695
        %v484 = vpow.pop %v483
        %v485 = vmul.f32 %v478, 1.442695
        %v486 = vpow.pop %v485
        %v487 = vsel %vm278, %v480, 0.0
        %488 = vadd.xlane.f32.xlu0 %v487
        %v489 = vpop.xlane.xlu0 %488
        %v490 = vsel %vm278, %v482, 0.0
        %491 = vadd.xlane.f32.xlu0 %v490
        %v492 = vpop.xlane.xlu0 %491
        %v493 = vsel %vm278, %v484, 0.0
        %494 = vadd.xlane.f32.xlu0 %v493
        %v495 = vpop.xlane.xlu0 %494
        %v496 = vsel %vm278, %v486, 0.0
        %497 = vadd.xlane.f32.xlu0 %v496
        %v498 = vpop.xlane.xlu0 %497
        %v499 = vrcp.pop %v489
        %v500 = vrcp.pop %v492
        %v501 = vrcp.pop %v495
        %v502 = vrcp.pop %v498
        %v503 = vmul.f32 %v480, %v499
        %v504 = vmul.f32 %v482, %v500
        %v505 = vmul.f32 %v484, %v501
        %v506 = vmul.f32 %v486, %v502
        %507 = vst.msk [vmem:[%s221] sm:$0xff] %vm278, %v503
        %508 = vst.msk [vmem:[%s221 + $0x8] sm:$0xff] %vm278, %v504
        %509 = vst.msk [vmem:[%s221 + $0x10] sm:$0xff] %vm278, %v505
        %510 = vst.msk [vmem:[%s221 + $0x18] sm:$0xff] %vm278, %v506
        %v511 = vpack.c.bf16 %v503, %v503
        %v512 = vpack.c.bf16 %v504, %v504
        %v513 = vpack.c.bf16 %v505, %v505
        %v514 = vpack.c.bf16 %v506, %v506
        %v516 = vsel %vm278, %v511, 0
        %vm518 = vcmask 1043456
        %v520 = vsel %vm518, %v274, 0
        %522 = vmatprep.subr.bf16.mxu0 0
        %523 = vmatpush1.bf16.msra.mxu0 %v520
        %524 = vmatprep.subr.bf16.mxu0 0
        %525 = vmatpush1.bf16.msra.mxu0 0
        %526 = vmatprep.subr.bf16.mxu0 0
        %527 = vmatpush1.bf16.msra.mxu0 0
        %528 = vmatprep.subr.bf16.mxu0 0
        %529 = vmatpush1.bf16.msra.mxu0 0
        %530 = vmatprep.subr.bf16.mxu0 0
        %531 = vmatpush1.bf16.msra.mxu0 0
        %532 = vmatprep.subr.bf16.mxu0 0
        %533 = vmatpush1.bf16.msra.mxu0 0
        %534 = vmatprep.subr.bf16.mxu0 0
        %535 = vmatpush1.bf16.msra.mxu0 0
        %536 = vmatprep.subr.bf16.mxu0 0
        %537 = vmatpush1.bf16.msra.mxu0 0
        %538 = vmatprep.subr.bf16.mxu0 0
        %539 = vmatpush1.bf16.msra.mxu0 0
        %540 = vmatprep.subr.bf16.mxu0 0
        %541 = vmatpush1.bf16.msra.mxu0 0
        %542 = vmatprep.subr.bf16.mxu0 0
        %543 = vmatpush1.bf16.msra.mxu0 0
        %544 = vmatprep.subr.bf16.mxu0 0
        %545 = vmatpush1.bf16.msra.mxu0 0
        %546 = vmatprep.subr.bf16.mxu0 0
        %547 = vmatpush1.bf16.msra.mxu0 0
        %548 = vmatprep.subr.bf16.mxu0 0
        %549 = vmatpush1.bf16.msra.mxu0 0
        %550 = vmatprep.subr.bf16.mxu0 0
        %551 = vmatpush1.bf16.msra.mxu0 0
        %552 = vmatprep.subr.bf16.mxu0 0
        %553 = vmatpush1.bf16.msra.mxu0 0
        %554 = vmatprep.mubr.bf16.mxu0 0
        %555 = vmatmul.mubr.bf16.gmra.mrb[0].mxu0 %v516
        %v556 = vpop.f32.mrb[0].mxu0
        %v557 = vadd.f32 0.0, %v556
        %v558 = vpop.f32.mrb[0].mxu0
        %v559 = vpop.f32.mrb[0].mxu0
        %v560 = vpop.f32.mrb[0].mxu0
        %561 = vdwg.mxu0
        %v563 = vsel %vm278, %v512, 0
        %v566 = vsel %vm518, %v275, 0
        %568 = vmatprep.subr.bf16.mxu0 0
        %569 = vmatpush1.bf16.msra.mxu0 %v566
        %570 = vmatprep.subr.bf16.mxu0 0
        %571 = vmatpush1.bf16.msra.mxu0 0
        %572 = vmatprep.subr.bf16.mxu0 0
        %573 = vmatpush1.bf16.msra.mxu0 0
        %574 = vmatprep.subr.bf16.mxu0 0
        %575 = vmatpush1.bf16.msra.mxu0 0
        %576 = vmatprep.subr.bf16.mxu0 0
        %577 = vmatpush1.bf16.msra.mxu0 0
        %578 = vmatprep.subr.bf16.mxu0 0
        %579 = vmatpush1.bf16.msra.mxu0 0
        %580 = vmatprep.subr.bf16.mxu0 0
        %581 = vmatpush1.bf16.msra.mxu0 0
        %582 = vmatprep.subr.bf16.mxu0 0
        %583 = vmatpush1.bf16.msra.mxu0 0
        %584 = vmatprep.subr.bf16.mxu0 0
        %585 = vmatpush1.bf16.msra.mxu0 0
        %586 = vmatprep.subr.bf16.mxu0 0
        %587 = vmatpush1.bf16.msra.mxu0 0
        %588 = vmatprep.subr.bf16.mxu0 0
        %589 = vmatpush1.bf16.msra.mxu0 0
        %590 = vmatprep.subr.bf16.mxu0 0
        %591 = vmatpush1.bf16.msra.mxu0 0
        %592 = vmatprep.subr.bf16.mxu0 0
        %593 = vmatpush1.bf16.msra.mxu0 0
        %594 = vmatprep.subr.bf16.mxu0 0
        %595 = vmatpush1.bf16.msra.mxu0 0
        %596 = vmatprep.subr.bf16.mxu0 0
        %597 = vmatpush1.bf16.msra.mxu0 0
        %598 = vmatprep.subr.bf16.mxu0 0
        %599 = vmatpush1.bf16.msra.mxu0 0
        %600 = vmatprep.mubr.bf16.mxu0 0
        %601 = vmatmul.mubr.bf16.gmra.mrb[0].mxu0 %v563
        %v602 = vpop.f32.mrb[0].mxu0
        %v603 = vadd.f32 0.0, %v602
        %v604 = vpop.f32.mrb[0].mxu0
        %v605 = vpop.f32.mrb[0].mxu0
        %v606 = vpop.f32.mrb[0].mxu0
        %607 = vdwg.mxu0
        %v609 = vsel %vm278, %v513, 0
        %v612 = vsel %vm518, %v276, 0
        %614 = vmatprep.subr.bf16.mxu0 0
        %615 = vmatpush1.bf16.msra.mxu0 %v612
        %616 = vmatprep.subr.bf16.mxu0 0
        %617 = vmatpush1.bf16.msra.mxu0 0
        %618 = vmatprep.subr.bf16.mxu0 0
        %619 = vmatpush1.bf16.msra.mxu0 0
        %620 = vmatprep.subr.bf16.mxu0 0
        %621 = vmatpush1.bf16.msra.mxu0 0
        %622 = vmatprep.subr.bf16.mxu0 0
        %623 = vmatpush1.bf16.msra.mxu0 0
        %624 = vmatprep.subr.bf16.mxu0 0
        %625 = vmatpush1.bf16.msra.mxu0 0
        %626 = vmatprep.subr.bf16.mxu0 0
        %627 = vmatpush1.bf16.msra.mxu0 0
        %628 = vmatprep.subr.bf16.mxu0 0
        %629 = vmatpush1.bf16.msra.mxu0 0
        %630 = vmatprep.subr.bf16.mxu0 0
        %631 = vmatpush1.bf16.msra.mxu0 0
        %632 = vmatprep.subr.bf16.mxu0 0
        %633 = vmatpush1.bf16.msra.mxu0 0
        %634 = vmatprep.subr.bf16.mxu0 0
        %635 = vmatpush1.bf16.msra.mxu0 0
        %636 = vmatprep.subr.bf16.mxu0 0
        %637 = vmatpush1.bf16.msra.mxu0 0
        %638 = vmatprep.subr.bf16.mxu0 0
        %639 = vmatpush1.bf16.msra.mxu0 0
        %640 = vmatprep.subr.bf16.mxu0 0
        %641 = vmatpush1.bf16.msra.mxu0 0
        %642 = vmatprep.subr.bf16.mxu0 0
        %643 = vmatpush1.bf16.msra.mxu0 0
        %644 = vmatprep.subr.bf16.mxu0 0
        %645 = vmatpush1.bf16.msra.mxu0 0
        %646 = vmatprep.mubr.bf16.mxu0 0
        %647 = vmatmul.mubr.bf16.gmra.mrb[0].mxu0 %v609
        %v648 = vpop.f32.mrb[0].mxu0
        %v649 = vadd.f32 0.0, %v648
        %v650 = vpop.f32.mrb[0].mxu0
        %v651 = vpop.f32.mrb[0].mxu0
        %v652 = vpop.f32.mrb[0].mxu0
        %653 = vdwg.mxu0
        %v655 = vsel %vm278, %v514, 0
        %v658 = vsel %vm518, %v277, 0
        %660 = vmatprep.subr.bf16.mxu0 0
        %661 = vmatpush1.bf16.msra.mxu0 %v658
        %662 = vmatprep.subr.bf16.mxu0 0
        %663 = vmatpush1.bf16.msra.mxu0 0
        %664 = vmatprep.subr.bf16.mxu0 0
        %665 = vmatpush1.bf16.msra.mxu0 0
        %666 = vmatprep.subr.bf16.mxu0 0
        %667 = vmatpush1.bf16.msra.mxu0 0
        %668 = vmatprep.subr.bf16.mxu0 0
        %669 = vmatpush1.bf16.msra.mxu0 0
        %670 = vmatprep.subr.bf16.mxu0 0
        %671 = vmatpush1.bf16.msra.mxu0 0
        %672 = vmatprep.subr.bf16.mxu0 0
        %673 = vmatpush1.bf16.msra.mxu0 0
        %674 = vmatprep.subr.bf16.mxu0 0
        %675 = vmatpush1.bf16.msra.mxu0 0
        %676 = vmatprep.subr.bf16.mxu0 0
        %677 = vmatpush1.bf16.msra.mxu0 0
        %678 = vmatprep.subr.bf16.mxu0 0
        %679 = vmatpush1.bf16.msra.mxu0 0
        %680 = vmatprep.subr.bf16.mxu0 0
        %681 = vmatpush1.bf16.msra.mxu0 0
        %682 = vmatprep.subr.bf16.mxu0 0
        %683 = vmatpush1.bf16.msra.mxu0 0
        %684 = vmatprep.subr.bf16.mxu0 0
        %685 = vmatpush1.bf16.msra.mxu0 0
        %686 = vmatprep.subr.bf16.mxu0 0
        %687 = vmatpush1.bf16.msra.mxu0 0
        %688 = vmatprep.subr.bf16.mxu0 0
        %689 = vmatpush1.bf16.msra.mxu0 0
        %690 = vmatprep.subr.bf16.mxu0 0
        %691 = vmatpush1.bf16.msra.mxu0 0
        %692 = vmatprep.mubr.bf16.mxu0 0
        %693 = vmatmul.mubr.bf16.gmra.mrb[0].mxu0 %v655
        %v694 = vpop.f32.mrb[0].mxu0
        %v695 = vadd.f32 0.0, %v694
        %v696 = vpop.f32.mrb[0].mxu0
        %v697 = vpop.f32.mrb[0].mxu0
        %v698 = vpop.f32.mrb[0].mxu0
        %699 = vdwg.mxu0
        %700 = vst.msk [vmem:[%s248] sm:$0xff] %vm278, %v557
        %701 = vst.msk [vmem:[%s248 + $0x8] sm:$0xff] %vm278, %v603
        %702 = vst.msk [vmem:[%s248 + $0x10] sm:$0xff] %vm278, %v649
        %703 = vst.msk [vmem:[%s248 + $0x18] sm:$0xff] %vm278, %v695
        %s704 = sand.u32 %s105, 1
        %s705 = scalar_lea.sflag [#allocation3], %s704
        %s706 = sand.u32 %s105, 1
        %s707 = smul.addr %s706, 32
        %s708 = scalar_lea.vmem [#allocation2], %s707
        %p709 = scmp.lt.s32.totalorder %s19, 1
        %s710 = scalar_select %p709, %s19, 1
        %s711 = smul.addr %s710, 4
        %s712 = smul.addr %s711, 8
        %s713 = scalar_lea.vmem %s4, %s712
        // Predicated region
        $region33: #{multi_head_attention.4} parent=31 // pred_check
          %p714 = pneg %p115
        $region34: #{multi_head_attention.4} parent=31 // pred_check_branch
          %716 = sbr.rel (%p714) target = $region36
        $region35: #{multi_head_attention.4} parent=31 // pred_region
          %s718 = ssub.s32 512, 512
          %719 = vsyncadd %s705, %s718
          %s720 = smul.addr %s19, 4
          %s721 = smul.addr %s720, 128
          %s722 = scalar_lea.hbm %s3, %s721
          %s723 = sshll.u32 %s708, 4
          %s724 = int_to_ptr.vmem [resolvable:$true] %s723
          %729 = dma.vmem_to_hbm [thread:$0]  %s724, 512, %s722, %s705, 128, 128, 8
        $region36: #{multi_head_attention.4} parent=31 // pred_fallthru
          _
        // Predicated region
        $region37: #{multi_head_attention.4} parent=31 // pred_check
          %p730 = pneg %p141
        $region38: #{multi_head_attention.4} parent=31 // pred_check_branch
          %732 = sbr.rel (%p730) target = $region40
        $region39: #{multi_head_attention.4} parent=31 // pred_region
          _
        $region40: #{multi_head_attention.4} parent=31 // pred_fallthru
          _
      $region32: #{multi_head_attention.4} parent=5 // pred_fallthru
        _
      %p733 = scmp.le.s32.totalorder 2, %s14
      // Predicated region
      $region41: #{multi_head_attention.4} parent=5 // pred_check
        %p734 = pneg %p733
      $region42: #{multi_head_attention.4} parent=5 // pred_check_branch
        %736 = sbr.rel (%p734) target = $region44
      $region43: #{multi_head_attention.4} parent=5 // pred_region
        %s737 = ssub.s32 %s14, 2
        // Predicated region
        $region45: #{multi_head_attention.4} parent=43 // pred_check
          %p738 = pneg %p121
        $region46: #{multi_head_attention.4} parent=43 // pred_check_branch
          %740 = sbr.rel (%p738) target = $region48
        $region47: #{multi_head_attention.4} parent=43 // pred_region
          %s741 = sand.u32 %s106, 1
          %s742 = scalar_lea.sflag [#allocation3], %s741
          %s743 = sand.u32 %s106, 1
          %s744 = smul.addr %s743, 32
          %s745 = scalar_lea.vmem [#allocation2], %s744
          %746 = dma.done %s742, 512
        $region48: #{multi_head_attention.4} parent=43 // pred_fallthru
          _
        // Predicated region
        $region49: #{multi_head_attention.4} parent=43 // pred_check
          %p747 = pneg %p147
        $region50: #{multi_head_attention.4} parent=43 // pred_check_branch
          %749 = sbr.rel (%p747) target = $region52
        $region51: #{multi_head_attention.4} parent=43 // pred_region
          %p750 = scmp.lt.s32.totalorder %s20, 1
          %s751 = scalar_select %p750, %s20, 1
          %s752 = smul.addr %s751, 4
          %s753 = smul.addr %s752, 8
          %s754 = scalar_lea.vmem %s4, %s753
        $region52: #{multi_head_attention.4} parent=43 // pred_fallthru
          _
      $region44: #{multi_head_attention.4} parent=5 // pred_fallthru
        _
    $region6: #{multi_head_attention.4} parent=1 // loop_footer
      %s18 = sadd.s32 1, %s14
    $region7: #{multi_head_attention.4} parent=1 // loop_footer_branch
      %13 = sbr.rel target = $region3
    $region8: #{multi_head_attention.4} parent=1 // loop_exit
      _
    %755 = vsyncpa [#allocation3], 1
    %s756 = scalar_lea.sflag [#allocation3], 1
    %757 = vsyncpa %s756, 1

</llo_original>
